<compile_context>
chip_gen: v7x
topology: tpu7x:2x2x1
jax: 0.10.0
libtpu: 0.0.40
codegen_flags: <defaults>
</compile_context>

<pallas_src>
import functools

import jax
import jax.numpy as jnp
from jax import lax
from jax.experimental import pallas as pl
from jax.experimental.pallas import tpu as pltpu

# Small synthetic shapes (consistent with the module's generic CNN forward).
N, C_IN, H, W = 2, 4, 16, 16
C_FEAT = 32
N_CLS = 10
KH = KW = 3

M = N * H * W                  # 512 im2col rows (one per output pixel)
K_TAPS = KH * KW * C_IN        # 36 conv taps
K_AUG = K_TAPS + 1             # 37 = taps + constant-1 bias column (unpadded; Mosaic masks K)
C_PAD = 128                    # lane-dense channel / class dim (zero padded)


def _model_wrapper_kernel(patch_ref, wc_ref, wl_ref, feat_ref, logit_ref):
    """Fused conv(im2col matmul) + ReLU + global-avg-pool + classifier.

    patch_ref : (M, K_AUG)     im2col patches, last column == 1.0 (bias lane)
    wc_ref    : (K_AUG, C_PAD) conv weight; row K_TAPS = [conv_b | 1.0 | 0...]
    wl_ref    : (C_PAD, C_PAD) classifier weight (in, out); row C_FEAT = [lin_b | 0...]
    feat_ref  : (N, C_PAD)     pre-logits features (valid window [:, :C_FEAT])
    logit_ref : (N, C_PAD)     logits              (valid window [:, :N_CLS])
    """
    # --- forward_features: 3x3 conv as ONE im2col matmul. The conv bias rides on the
    #     constant-1 patch column, so no broadcast add is needed.
    y = jnp.dot(patch_ref[...], wc_ref[...],
                preferred_element_type=jnp.float32)            # (M, C_PAD)
    y = jnp.maximum(y, 0.0)   # ReLU; lane C_FEAT holds the constant 1 (ReLU(1) = 1),
                              # padded lanes stay exactly 0.

    # --- forward_head(pre_logits=True): global average pool. 512 -> (2, 256) splits the
    #     sublane dim on a tile boundary, so the reshape is a free re-view and the reduce
    #     runs on VPU/XLU (MXU stays free, no pool-matrix iota construction).
    feat = jnp.sum(y.reshape(N, H * W, C_PAD), axis=1) * (1.0 / (H * W))   # (N, C_PAD)
    feat_ref[...] = feat                                     # lane-dense (128-wide) store

    # --- get_classifier()(features): Linear. The classifier bias rides on the constant-1
    #     feature lane (row C_FEAT of wl), so again no broadcast add.
    logit_ref[...] = jnp.dot(feat, wl_ref[...],
                             preferred_element_type=jnp.float32)           # (N, C_PAD)


@functools.partial(jax.jit, static_argnames=("training",))
def model_wrapper_forward(x_nchw, conv_w, conv_b, lin_w, lin_b, training=False):
    """ModelWrapper.forward.

    x_nchw : (N, C_IN, H, W)         -- PyTorch NCHW convention
    conv_w : (C_FEAT, C_IN, KH, KW)  -- PyTorch conv weight layout
    conv_b : (C_FEAT,)
    lin_w  : (N_CLS, C_FEAT)         -- PyTorch Linear weight layout (out, in)
    lin_b  : (N_CLS,)
    """
    f32 = jnp.float32

    # ---- im2col (layout plumbing; allow_input_fusion lets XLA fold it into the operand) ----
    x_nhwc = jnp.transpose(x_nchw, (0, 2, 3, 1)).astype(f32)               # (N,H,W,Cin)
    x_halo = jnp.pad(x_nhwc, ((0, 0), (1, 1), (1, 1), (0, 0)))             # SAME halo
    taps = [x_halo[:, kh:kh + H, kw:kw + W, :]
            for kh in range(KH) for kw in range(KW)]                       # 9 x (N,H,W,Cin)
    patches = jnp.concatenate(taps, axis=-1).reshape(M, K_TAPS)            # (512, 36)
    patches = jnp.concatenate([patches, jnp.ones((M, 1), f32)], axis=-1)   # (512, 37)

    # conv weight in kh-kw-cin contraction order, plus the bias row + constant-1 marker lane.
    wc = jnp.transpose(conv_w, (2, 3, 1, 0)).reshape(K_TAPS, C_FEAT).astype(f32)   # (36, 32)
    wc = jnp.pad(wc, ((0, 0), (0, C_PAD - C_FEAT)))                                # (36, 128)
    bias_row = jnp.concatenate(
        [conv_b.astype(f32), jnp.ones((1,), f32),
         jnp.zeros((C_PAD - C_FEAT - 1,), f32)]).reshape(1, C_PAD)                 # (1, 128)
    wc = jnp.concatenate([wc, bias_row], axis=0)                                   # (37, 128)

    # classifier weight (in, out) with its bias on the constant-1 feature lane's row.
    wl_top = jnp.pad(jnp.transpose(lin_w).astype(f32),
                     ((0, 0), (0, C_PAD - N_CLS)))                                 # (32, 128)
    bl_row = jnp.pad(lin_b.astype(f32).reshape(1, N_CLS),
                     ((0, 0), (0, C_PAD - N_CLS)))                                 # (1, 128)
    wl = jnp.concatenate(
        [wl_top, bl_row, jnp.zeros((C_PAD - C_FEAT - 1, C_PAD), f32)], axis=0)     # (128, 128)

    cost = pl.CostEstimate(
        flops=2 * M * K_AUG * C_PAD + M * C_PAD + 2 * N * C_PAD * C_PAD,
        transcendentals=0,
        bytes_accessed=4 * (M * K_AUG + K_AUG * C_PAD + C_PAD * C_PAD + 2 * N * C_PAD),
    )

    feat_slab, logit_slab = pl.pallas_call(
        _model_wrapper_kernel,
        out_shape=(
            jax.ShapeDtypeStruct((N, C_PAD), f32),
            jax.ShapeDtypeStruct((N, C_PAD), f32),
        ),
        in_specs=[
            pl.BlockSpec(memory_space=pltpu.MemorySpace.VMEM),   # patches (512, 37)
            pl.BlockSpec(memory_space=pltpu.MemorySpace.VMEM),   # wc      (37, 128)
            pl.BlockSpec(memory_space=pltpu.MemorySpace.VMEM),   # wl      (128, 128)
        ],
        out_specs=(
            pl.BlockSpec(memory_space=pltpu.MemorySpace.VMEM),
            pl.BlockSpec(memory_space=pltpu.MemorySpace.VMEM),
        ),
        compiler_params=pltpu.CompilerParams(
            allow_input_fusion=[True, True, True]),
        cost_estimate=cost,
    )(patches, wc, wl)

    feat = feat_slab[:, :C_FEAT]
    logit = logit_slab[:, :N_CLS]

    if training:
        # nn.Module training=True path: return logits only.
        return logit
    # eval-mode ModelWrapper.forward_head returns both.
    return {"logit": logit, "feature": feat}


def _reference(x_nchw, conv_w, conv_b, lin_w, lin_b):
    """Pure-JAX reference replicating the PyTorch semantics (for sanity check)."""
    x_nhwc = jnp.transpose(x_nchw, (0, 2, 3, 1)).astype(jnp.float32)
    w_hwio = jnp.transpose(conv_w, (2, 3, 1, 0)).astype(jnp.float32)
    y = lax.conv_general_dilated(
        x_nhwc, w_hwio, window_strides=(1, 1), padding="SAME",
        dimension_numbers=("NHWC", "HWIO", "NHWC"))
    y = jnp.maximum(y + conv_b.reshape(1, 1, 1, -1), 0.0)
    feat = jnp.mean(y, axis=(1, 2))                                   # (N, Cfeat)
    logit = feat @ lin_w.T + lin_b
    return {"logit": logit, "feature": feat}


if __name__ == "__main__":
    key = jax.random.PRNGKey(0)
    kx, kw1, kb1, kw2, kb2 = jax.random.split(key, 5)

    # Deterministic synthetic parameters (no checkpoint loading).
    # TODO(synk): ModelWrapper.load_model / convert_state_dict / set_grads are torch
    # checkpoint-I/O and autograd plumbing with no Pallas equivalent; only forward is done.
    x = jax.random.normal(kx, (N, C_IN, H, W), dtype=jnp.float32)
    conv_w = jax.random.normal(kw1, (C_FEAT, C_IN, KH, KW), dtype=jnp.float32) * 0.1
    conv_b = jax.random.normal(kb1, (C_FEAT,), dtype=jnp.float32) * 0.1
    lin_w = jax.random.normal(kw2, (N_CLS, C_FEAT), dtype=jnp.float32) * 0.1
    lin_b = jax.random.normal(kb2, (N_CLS,), dtype=jnp.float32) * 0.1

    out = model_wrapper_forward(x, conv_w, conv_b, lin_w, lin_b, training=False)
    jax.block_until_ready(out)

    ref = _reference(x, conv_w, conv_b, lin_w, lin_b)
    assert jnp.allclose(out["feature"], ref["feature"], atol=1e-4, rtol=1e-4)
    assert jnp.allclose(out["logit"], ref["logit"], atol=1e-4, rtol=1e-4)

    print("KERNEL_OK")
</pallas_src>

<mosaic_0001>
module attributes {stable_mosaic.version = 11 : i64} {
  func.func @_model_wrapper_kernel(%arg0: memref<512x37xf32, #tpu.memory_space<vmem>>, %arg1: memref<37x128xf32, #tpu.memory_space<vmem>>, %arg2: memref<128x128xf32, #tpu.memory_space<vmem>>, %arg3: memref<2x128xf32, #tpu.memory_space<vmem>>, %arg4: memref<2x128xf32, #tpu.memory_space<vmem>>) attributes {dimension_semantics = [], scalar_prefetch = 0 : i64, scratch_operands = 0 : i64, tpu.core_type = #tpu.core_type<tc>} {
    %c0 = arith.constant 0 : index
    %c0_0 = arith.constant 0 : index
    %0 = vector.load %arg0[%c0, %c0_0] : memref<512x37xf32, #tpu.memory_space<vmem>>, vector<512x37xf32>
    %c0_1 = arith.constant 0 : index
    %c0_2 = arith.constant 0 : index
    %1 = vector.load %arg1[%c0_1, %c0_2] : memref<37x128xf32, #tpu.memory_space<vmem>>, vector<37x128xf32>
    %cst = arith.constant dense<0.000000e+00> : vector<512x128xf32>
    %2 = tpu.matmul %0, %1, %cst {dimension_numbers = #tpu.dot_dimension_numbers<[1], [0], [0], [1], [0, 0, 1, 1], [], []>} : vector<512x37xf32>, vector<37x128xf32>, vector<512x128xf32> -> vector<512x128xf32>
    %cst_3 = arith.constant 0.000000e+00 : f32
    %3 = vector.broadcast %cst_3 : f32 to vector<512x128xf32>
    %4 = arith.maximumf %2, %3 : vector<512x128xf32>
    %5 = vector.shape_cast %4 : vector<512x128xf32> to vector<2x256x128xf32>
    %cst_4 = arith.constant dense<0.000000e+00> : vector<2x128xf32>
    %6 = vector.multi_reduction <add>, %5, %cst_4 [1] : vector<2x256x128xf32> to vector<2x128xf32>
    %cst_5 = arith.constant 3.906250e-03 : f32
    %7 = vector.broadcast %cst_5 : f32 to vector<2x128xf32>
    %8 = arith.mulf %6, %7 : vector<2x128xf32>
    %c0_6 = arith.constant 0 : index
    %c0_7 = arith.constant 0 : index
    %9 = vector.load %arg3[%c0_6, %c0_7] : memref<2x128xf32, #tpu.memory_space<vmem>>, vector<2x128xf32>
    tpu.vector_store %arg3[%c0_6, %c0_7], %8 {strides = array<i32>} : memref<2x128xf32, #tpu.memory_space<vmem>>, vector<2x128xf32>,
    %c0_8 = arith.constant 0 : index
    %c0_9 = arith.constant 0 : index
    %10 = vector.load %arg2[%c0_8, %c0_9] : memref<128x128xf32, #tpu.memory_space<vmem>>, vector<128x128xf32>
    %cst_10 = arith.constant dense<0.000000e+00> : vector<2x128xf32>
    %11 = tpu.matmul %8, %10, %cst_10 {dimension_numbers = #tpu.dot_dimension_numbers<[1], [0], [0], [1], [0, 0, 1, 1], [], []>} : vector<2x128xf32>, vector<128x128xf32>, vector<2x128xf32> -> vector<2x128xf32>
    %c0_11 = arith.constant 0 : index
    %c0_12 = arith.constant 0 : index
    %12 = vector.load %arg4[%c0_11, %c0_12] : memref<2x128xf32, #tpu.memory_space<vmem>>, vector<2x128xf32>
    tpu.vector_store %arg4[%c0_11, %c0_12], %11 {strides = array<i32>} : memref<2x128xf32, #tpu.memory_space<vmem>>, vector<2x128xf32>,
    return
  }
}

</mosaic_0001>

<llo_original>
// kernel: model_wrapper_forward.2
$region0: #{model_wrapper_forward.2}
  #allocation0 [shape = 'u32[]', space=smem, size = 0x4, offset = 0x4, fixed_abs, tag = 'smem constant byte address 0x4 - core index']
  #allocation1 [shape = 'u32[144,128]{1,0:T(1,128)}', space=vmem, size = 0x12000, scoped, tag = 'internal scratch']
  #allocation2 [shape = 'u32[2048]{0}', space=vmem, size = 0x2000, scoped, tag = 'scoped memory for model_wrapper_forward.2']
  #allocation3 [shape = 'u32[2048]{0}', space=vmem, size = 0x2000, scoped, tag = 'scoped memory for model_wrapper_forward.2']
  #allocation4 [shape = 'u32[2048]{0}', space=vmem, size = 0x2000, scoped, tag = 'scoped memory for model_wrapper_forward.2']
  #allocation5 [shape = 'u32[2048]{0}', space=vmem, size = 0x2000, scoped, tag = 'scoped memory for model_wrapper_forward.2']
  #allocation6 [shape = 'u32[2048]{0}', space=vmem, size = 0x2000, scoped, tag = 'scoped memory for model_wrapper_forward.2']
  #allocation7 [shape = 'u32[2048]{0}', space=vmem, size = 0x2000, scoped, tag = 'scoped memory for model_wrapper_forward.2']
  #allocation8 [shape = 'u32[2048]{0}', space=vmem, size = 0x2000, scoped, tag = 'scoped memory for model_wrapper_forward.2']
  #allocation9 [shape = 'u32[2048]{0}', space=vmem, size = 0x2000, scoped, tag = 'scoped memory for model_wrapper_forward.2']
  #allocation10 [shape = 'u32[2048]{0}', space=vmem, size = 0x2000, scoped, tag = 'scoped memory for model_wrapper_forward.2']
  #allocation11 [shape = 'u32[2048]{0}', space=vmem, size = 0x2000, scoped, tag = 'scoped memory for model_wrapper_forward.2']
  #allocation12 [shape = 'u32[2048]{0}', space=vmem, size = 0x2000, scoped, tag = 'scoped memory for model_wrapper_forward.2']
  #allocation13 [shape = 'u32[2048]{0}', space=vmem, size = 0x2000, scoped, tag = 'scoped memory for model_wrapper_forward.2']
  #allocation14 [shape = 'u32[2048]{0}', space=vmem, size = 0x2000, scoped, tag = 'scoped memory for model_wrapper_forward.2']
  #allocation15 [shape = 'u32[2048]{0}', space=vmem, size = 0x2000, scoped, tag = 'scoped memory for model_wrapper_forward.2']
  #allocation16 [shape = 'u32[2048]{0}', space=vmem, size = 0x2000, scoped, tag = 'scoped memory for model_wrapper_forward.2']
  #allocation17 [shape = 'u32[2048]{0}', space=vmem, size = 0x2000, scoped, tag = 'scoped memory for model_wrapper_forward.2']
  #allocation18 [shape = 'u32[2048]{0}', space=vmem, size = 0x2000, scoped, tag = 'scoped memory for model_wrapper_forward.2']
  #allocation19 [shape = 'u32[2048]{0}', space=vmem, size = 0x2000, scoped, tag = 'scoped memory for model_wrapper_forward.2']
  #allocation20 [shape = 'u32[2048]{0}', space=vmem, size = 0x2000, scoped, tag = 'scoped memory for model_wrapper_forward.2']
  #allocation21 [shape = 'u32[2048]{0}', space=vmem, size = 0x2000, scoped, tag = 'scoped memory for model_wrapper_forward.2']
  #allocation22 [shape = 'u32[2048]{0}', space=vmem, size = 0x2000, scoped, tag = 'scoped memory for model_wrapper_forward.2']
  #allocation23 [shape = 'u32[2048]{0}', space=vmem, size = 0x2000, scoped, tag = 'scoped memory for model_wrapper_forward.2']
  #allocation24 [shape = 'u32[2048]{0}', space=vmem, size = 0x2000, scoped, tag = 'scoped memory for model_wrapper_forward.2']
  #allocation25 [shape = 'u32[2048]{0}', space=vmem, size = 0x2000, scoped, tag = 'scoped memory for model_wrapper_forward.2']
  #allocation26 [shape = 'u32[2048]{0}', space=vmem, size = 0x2000, scoped, tag = 'scoped memory for model_wrapper_forward.2']
  %s0 = inlined_call_operand.vmem [shape: f32[512,36], index: 0, kind: input, shape index: {}]
  %s1 = inlined_call_operand.<no memory space> [shape: f32[], index: 1, kind: input, shape index: {}]
  %s2 = inlined_call_operand.vmem [shape: f32[1,10], index: 2, kind: input, shape index: {}]
  %s3 = inlined_call_operand.<no memory space> [shape: f32[], index: 3, kind: input, shape index: {}]
  %s4 = inlined_call_operand.vmem [shape: f32[32,10], index: 4, kind: input, shape index: {}]
  %s5 = inlined_call_operand.<no memory space> [shape: s32[], index: 5, kind: input, shape index: {}]
  %s6 = inlined_call_operand.<no memory space> [shape: f32[], index: 6, kind: input, shape index: {}]
  %s7 = inlined_call_operand.<no memory space> [shape: s32[], index: 7, kind: input, shape index: {}]
  %s8 = inlined_call_operand.vmem [shape: f32[128], index: 8, kind: input, shape index: {}]
  %s9 = inlined_call_operand.vmem [shape: f32[36,32], index: 9, kind: input, shape index: {}]
  %s10 = inlined_call_operand.vmem [shape: f32[1,128], index: 10, kind: input, shape index: {}]
  %s11 = inlined_call_operand.<no memory space> [shape: s32[], index: 11, kind: input, shape index: {}]
  %s12 = inlined_call_operand.hbm [shape: f32[2,128], index: 12, kind: output, shape index: {0}]
  %s13 = inlined_call_operand.hbm [shape: f32[2,128], index: 13, kind: output, shape index: {1}]
  %14 = xla_tuple %s12, %s13
  %s15 = sld [smem:[#allocation0]]
  $region42: #{model_wrapper_forward.2} parent=0
    _
  %s17 = ssub.s32 1, %s15
  %s18 = scalar_select 0, %s17, %s15
  %v19 = vstv %s1
  %v20 = vstv %s3
  %v21 = vstv %s6
  %v22 = vstv %s6
  %v23 = vstv %s11
  %v24 = vstv %s3
  %v25 = vstv %s3
  %v26 = vstv %s5
  %v27 = vstv %s6
  %v28 = vstv %s7
  $region1: #{model_wrapper_forward.2} parent=0
    #allocation27 [shape = 'u8[1024]{0}', space=vmem, size = 0x400, scoped, tag = 'output window, operand 0, single buffered']
    #allocation28 [shape = 's32[1]{0}', space=sflag, size = 0x4, scoped, tag = 'scoped memory for model_wrapper_forward.2']
    #allocation29 [shape = 'u8[1024]{0}', space=vmem, size = 0x400, scoped, tag = 'output window, operand 1, single buffered']
    #allocation30 [shape = 's32[1]{0}', space=sflag, size = 0x4, scoped, tag = 'scoped memory for model_wrapper_forward.2']
    #allocation31 [shape = 'u8[262144]{0}', space=vmem, size = 0x40000, dematerialized = true, scoped, tag = 'FusionAdapter Buffer %fusion.1 = f32[512,37]{1,0:T(8,128)} fusion(%param_0.57, %param_1.39), kind=kLoop, calls=%fused_computation.9.clone, metadata={op_name="jit(model_wrapper_forward)/concatenate" stack_frame_id=14}']
    #allocation32 [shape = 'u8[20480]{0}', space=vmem, size = 0x5000, dematerialized = true, scoped, tag = 'FusionAdapter Buffer %select_maximum_fusion.2 = f32[37,128]{1,0:T(8,128)} fusion(%param_9.12, %param_3.14, %param_10.3, %param_6.18, %param_11.5), kind=kLoop, calls=%fused_computation.23.clone.clone, metadata={op_name="jit(model_wrapper_forward)/concatenate" stack_frame_id=19}']
    #allocation33 [shape = 'u8[65536]{0}', space=vmem, size = 0x10000, dematerialized = true, scoped, tag = 'FusionAdapter Buffer %fusion.3 = f32[128,128]{1,0:T(8,128)} fusion(%param_2.17, %param_3.14, %param_4.13, %param_5.12, %param_6.18, %param_7.11, %param_8.7), kind=kLoop, calls=%fused_computation.13.clone.clone, metadata={op_name="jit(model_wrapper_forward)/concatenate" stack_frame_id=24}']
    %29 = vsyncpa [#allocation28], 0
    %30 = vsyncpa [#allocation30], 0
    // Predicated region
    $region2: #{model_wrapper_forward.2} parent=1 // pred_check
      _
    $region3: #{model_wrapper_forward.2} parent=1 // pred_check_branch
      %32 = sbr.rel (0) target = $region5
    $region4: #{model_wrapper_forward.2} parent=1 // pred_region
      _
    $region5: #{model_wrapper_forward.2} parent=1 // pred_fallthru
      _
    // Predicated region
    $region6: #{model_wrapper_forward.2} parent=1 // pred_check
      _
    $region7: #{model_wrapper_forward.2} parent=1 // pred_check_branch
      %34 = sbr.rel (0) target = $region9
    $region8: #{model_wrapper_forward.2} parent=1 // pred_region
      _
    $region9: #{model_wrapper_forward.2} parent=1 // pred_fallthru
      _
    // Predicated region
    $region10: #{model_wrapper_forward.2} parent=1 // pred_check
      _
    $region11: #{model_wrapper_forward.2} parent=1 // pred_check_branch
      %36 = sbr.rel (0) target = $region13
    $region12: #{model_wrapper_forward.2} parent=1 // pred_region
      %s38 = ssub.s32 1, 0
      %s39 = smul.u32 16, %s38
      %p40 = scmp.lt.s32.totalorder 0, 0
      %s41 = scalar_select %p40, 0, 0
      %s42 = scalar_lea.vmem %s10, %s41
      %s44 = ssub.s32 1, 0
      %s45 = smul.u32 16, %s44
    $region13: #{model_wrapper_forward.2} parent=1 // pred_fallthru
      _
    // Predicated region
    $region14: #{model_wrapper_forward.2} parent=1 // pred_check
      _
    $region15: #{model_wrapper_forward.2} parent=1 // pred_check_branch
      %47 = sbr.rel (0) target = $region17
    $region16: #{model_wrapper_forward.2} parent=1 // pred_region
      %s49 = ssub.s32 1, 0
      %s50 = smul.u32 16, %s49
      %p51 = scmp.lt.s32.totalorder 0, 0
      %s52 = scalar_select %p51, 0, 0
      %s53 = scalar_lea.vmem %s2, %s52
      %s55 = ssub.s32 1, 0
      %s56 = smul.u32 16, %s55
    $region17: #{model_wrapper_forward.2} parent=1 // pred_fallthru
      _
    // Predicated region
    $region18: #{model_wrapper_forward.2} parent=1 // pred_check
      _
    $region19: #{model_wrapper_forward.2} parent=1 // pred_check_branch
      %58 = sbr.rel (0) target = $region21
    $region20: #{model_wrapper_forward.2} parent=1 // pred_region
      _
    $region21: #{model_wrapper_forward.2} parent=1 // pred_fallthru
      _
    // Predicated region
    $region22: #{model_wrapper_forward.2} parent=1 // pred_check
      _
    $region23: #{model_wrapper_forward.2} parent=1 // pred_check_branch
      %60 = sbr.rel (0) target = $region25
    $region24: #{model_wrapper_forward.2} parent=1 // pred_region
      _
    $region25: #{model_wrapper_forward.2} parent=1 // pred_fallthru
      _
    %s62 = ssub.s32 1, 0
    %s63 = smul.u32 16, %s62
    %p64 = scmp.lt.s32.totalorder 0, 0
    %s65 = scalar_select %p64, 0, 0
    %s66 = scalar_lea.vmem %s10, %s65
    %s68 = ssub.s32 1, 0
    %s69 = smul.u32 16, %s68
    %p70 = scmp.lt.s32.totalorder 0, 0
    %s71 = scalar_select %p70, 0, 0
    %s72 = scalar_lea.vmem %s2, %s71
    %s74 = ssub.s32 1, 0
    %s75 = smul.u32 16, %s74
    %p76 = scmp.lt.s32.totalorder 0, 0
    %s77 = scalar_select %p76, 0, 0
    %s78 = scalar_lea.vmem %s10, %s77
    %s80 = ssub.s32 1, 0
    %s81 = smul.u32 16, %s80
    %s83 = ssub.s32 1, 0
    %s84 = smul.u32 16, %s83
    %p85 = scmp.lt.s32.totalorder 0, 0
    %s86 = scalar_select %p85, 0, 0
    %s87 = scalar_lea.vmem %s2, %s86
    %s89 = ssub.s32 1, 0
    %s90 = smul.u32 16, %s89
    %v91 = vld [vmem:[%s0] sm:$0xff]
    %v92 = vlaneseq
    %v93 = vand.u32 %v92, 127
    %vm95 = vcmp.lt.s32.totalorder %v93, 36
    %v96 = vsel %vm95, %v91, %v19
    %98 = vst [vmem:[#allocation31] sm:$0xff] %v96
    %s99 = scalar_lea.vmem %s0, 8
    %v100 = vld [vmem:[%s99] sm:$0xff]
    %v101 = vlaneseq
    %v102 = vand.u32 %v101, 127
    %vm104 = vcmp.lt.s32.totalorder %v102, 36
    %v105 = vsel %vm104, %v100, %v19
    %s106 = scalar_lea.vmem [#allocation31], 8
    %108 = vst [vmem:[%s106] sm:$0xff] %v105
    %s109 = scalar_lea.vmem %s0, 16
    %v110 = vld [vmem:[%s109] sm:$0xff]
    %v111 = vlaneseq
    %v112 = vand.u32 %v111, 127
    %vm114 = vcmp.lt.s32.totalorder %v112, 36
    %v115 = vsel %vm114, %v110, %v19
    %s116 = scalar_lea.vmem [#allocation31], 16
    %118 = vst [vmem:[%s116] sm:$0xff] %v115
    %s119 = scalar_lea.vmem %s0, 24
    %v120 = vld [vmem:[%s119] sm:$0xff]
    %v121 = vlaneseq
    %v122 = vand.u32 %v121, 127
    %vm124 = vcmp.lt.s32.totalorder %v122, 36
    %v125 = vsel %vm124, %v120, %v19
    %s126 = scalar_lea.vmem [#allocation31], 24
    %128 = vst [vmem:[%s126] sm:$0xff] %v125
    %s129 = scalar_lea.vmem %s0, 32
    %v130 = vld [vmem:[%s129] sm:$0xff]
    %v131 = vlaneseq
    %v132 = vand.u32 %v131, 127
    %vm134 = vcmp.lt.s32.totalorder %v132, 36
    %v135 = vsel %vm134, %v130, %v19
    %s136 = scalar_lea.vmem [#allocation31], 32
    %138 = vst [vmem:[%s136] sm:$0xff] %v135
    %s139 = scalar_lea.vmem %s0, 40
    %v140 = vld [vmem:[%s139] sm:$0xff]
    %v141 = vlaneseq
    %v142 = vand.u32 %v141, 127
    %vm144 = vcmp.lt.s32.totalorder %v142, 36
    %v145 = vsel %vm144, %v140, %v19
    %s146 = scalar_lea.vmem [#allocation31], 40
    %148 = vst [vmem:[%s146] sm:$0xff] %v145
    %s149 = scalar_lea.vmem %s0, 48
    %v150 = vld [vmem:[%s149] sm:$0xff]
    %v151 = vlaneseq
    %v152 = vand.u32 %v151, 127
    %vm154 = vcmp.lt.s32.totalorder %v152, 36
    %v155 = vsel %vm154, %v150, %v19
    %s156 = scalar_lea.vmem [#allocation31], 48
    %158 = vst [vmem:[%s156] sm:$0xff] %v155
    %s159 = scalar_lea.vmem %s0, 56
    %v160 = vld [vmem:[%s159] sm:$0xff]
    %v161 = vlaneseq
    %v162 = vand.u32 %v161, 127
    %vm164 = vcmp.lt.s32.totalorder %v162, 36
    %v165 = vsel %vm164, %v160, %v19
    %s166 = scalar_lea.vmem [#allocation31], 56
    %168 = vst [vmem:[%s166] sm:$0xff] %v165
    %s169 = scalar_lea.vmem %s0, 64
    %v170 = vld [vmem:[%s169] sm:$0xff]
    %v171 = vlaneseq
    %v172 = vand.u32 %v171, 127
    %vm174 = vcmp.lt.s32.totalorder %v172, 36
    %v175 = vsel %vm174, %v170, %v19
    %s176 = scalar_lea.vmem [#allocation31], 64
    %178 = vst [vmem:[%s176] sm:$0xff] %v175
    %s179 = scalar_lea.vmem %s0, 72
    %v180 = vld [vmem:[%s179] sm:$0xff]
    %v181 = vlaneseq
    %v182 = vand.u32 %v181, 127
    %vm184 = vcmp.lt.s32.totalorder %v182, 36
    %v185 = vsel %vm184, %v180, %v19
    %s186 = scalar_lea.vmem [#allocation31], 72
    %188 = vst [vmem:[%s186] sm:$0xff] %v185
    %s189 = scalar_lea.vmem %s0, 80
    %v190 = vld [vmem:[%s189] sm:$0xff]
    %v191 = vlaneseq
    %v192 = vand.u32 %v191, 127
    %vm194 = vcmp.lt.s32.totalorder %v192, 36
    %v195 = vsel %vm194, %v190, %v19
    %s196 = scalar_lea.vmem [#allocation31], 80
    %198 = vst [vmem:[%s196] sm:$0xff] %v195
    %s199 = scalar_lea.vmem %s0, 88
    %v200 = vld [vmem:[%s199] sm:$0xff]
    %v201 = vlaneseq
    %v202 = vand.u32 %v201, 127
    %vm204 = vcmp.lt.s32.totalorder %v202, 36
    %v205 = vsel %vm204, %v200, %v19
    %s206 = scalar_lea.vmem [#allocation31], 88
    %208 = vst [vmem:[%s206] sm:$0xff] %v205
    %s209 = scalar_lea.vmem %s0, 96
    %v210 = vld [vmem:[%s209] sm:$0xff]
    %v211 = vlaneseq
    %v212 = vand.u32 %v211, 127
    %vm214 = vcmp.lt.s32.totalorder %v212, 36
    %v215 = vsel %vm214, %v210, %v19
    %s216 = scalar_lea.vmem [#allocation31], 96
    %218 = vst [vmem:[%s216] sm:$0xff] %v215
    %s219 = scalar_lea.vmem %s0, 104
    %v220 = vld [vmem:[%s219] sm:$0xff]
    %v221 = vlaneseq
    %v222 = vand.u32 %v221, 127
    %vm224 = vcmp.lt.s32.totalorder %v222, 36
    %v225 = vsel %vm224, %v220, %v19
    %s226 = scalar_lea.vmem [#allocation31], 104
    %228 = vst [vmem:[%s226] sm:$0xff] %v225
    %s229 = scalar_lea.vmem %s0, 112
    %v230 = vld [vmem:[%s229] sm:$0xff]
    %v231 = vlaneseq
    %v232 = vand.u32 %v231, 127
    %vm234 = vcmp.lt.s32.totalorder %v232, 36
    %v235 = vsel %vm234, %v230, %v19
    %s236 = scalar_lea.vmem [#allocation31], 112
    %238 = vst [vmem:[%s236] sm:$0xff] %v235
    %s239 = scalar_lea.vmem %s0, 120
    %v240 = vld [vmem:[%s239] sm:$0xff]
    %v241 = vlaneseq
    %v242 = vand.u32 %v241, 127
    %vm244 = vcmp.lt.s32.totalorder %v242, 36
    %v245 = vsel %vm244, %v240, %v19
    %s246 = scalar_lea.vmem [#allocation31], 120
    %248 = vst [vmem:[%s246] sm:$0xff] %v245
    %s249 = scalar_lea.vmem %s0, 128
    %v250 = vld [vmem:[%s249] sm:$0xff]
    %v251 = vlaneseq
    %v252 = vand.u32 %v251, 127
    %vm254 = vcmp.lt.s32.totalorder %v252, 36
    %v255 = vsel %vm254, %v250, %v19
    %s256 = scalar_lea.vmem [#allocation31], 128
    %258 = vst [vmem:[%s256] sm:$0xff] %v255
    %s259 = scalar_lea.vmem %s0, 136
    %v260 = vld [vmem:[%s259] sm:$0xff]
    %v261 = vlaneseq
    %v262 = vand.u32 %v261, 127
    %vm264 = vcmp.lt.s32.totalorder %v262, 36
    %v265 = vsel %vm264, %v260, %v19
    %s266 = scalar_lea.vmem [#allocation31], 136
    %268 = vst [vmem:[%s266] sm:$0xff] %v265
    %s269 = scalar_lea.vmem %s0, 144
    %v270 = vld [vmem:[%s269] sm:$0xff]
    %v271 = vlaneseq
    %v272 = vand.u32 %v271, 127
    %vm274 = vcmp.lt.s32.totalorder %v272, 36
    %v275 = vsel %vm274, %v270, %v19
    %s276 = scalar_lea.vmem [#allocation31], 144
    %278 = vst [vmem:[%s276] sm:$0xff] %v275
    %s279 = scalar_lea.vmem %s0, 152
    %v280 = vld [vmem:[%s279] sm:$0xff]
    %v281 = vlaneseq
    %v282 = vand.u32 %v281, 127
    %vm284 = vcmp.lt.s32.totalorder %v282, 36
    %v285 = vsel %vm284, %v280, %v19
    %s286 = scalar_lea.vmem [#allocation31], 152
    %288 = vst [vmem:[%s286] sm:$0xff] %v285
    %s289 = scalar_lea.vmem %s0, 160
    %v290 = vld [vmem:[%s289] sm:$0xff]
    %v291 = vlaneseq
    %v292 = vand.u32 %v291, 127
    %vm294 = vcmp.lt.s32.totalorder %v292, 36
    %v295 = vsel %vm294, %v290, %v19
    %s296 = scalar_lea.vmem [#allocation31], 160
    %298 = vst [vmem:[%s296] sm:$0xff] %v295
    %s299 = scalar_lea.vmem %s0, 168
    %v300 = vld [vmem:[%s299] sm:$0xff]
    %v301 = vlaneseq
    %v302 = vand.u32 %v301, 127
    %vm304 = vcmp.lt.s32.totalorder %v302, 36
    %v305 = vsel %vm304, %v300, %v19
    %s306 = scalar_lea.vmem [#allocation31], 168
    %308 = vst [vmem:[%s306] sm:$0xff] %v305
    %s309 = scalar_lea.vmem %s0, 176
    %v310 = vld [vmem:[%s309] sm:$0xff]
    %v311 = vlaneseq
    %v312 = vand.u32 %v311, 127
    %vm314 = vcmp.lt.s32.totalorder %v312, 36
    %v315 = vsel %vm314, %v310, %v19
    %s316 = scalar_lea.vmem [#allocation31], 176
    %318 = vst [vmem:[%s316] sm:$0xff] %v315
    %s319 = scalar_lea.vmem %s0, 184
    %v320 = vld [vmem:[%s319] sm:$0xff]
    %v321 = vlaneseq
    %v322 = vand.u32 %v321, 127
    %vm324 = vcmp.lt.s32.totalorder %v322, 36
    %v325 = vsel %vm324, %v320, %v19
    %s326 = scalar_lea.vmem [#allocation31], 184
    %328 = vst [vmem:[%s326] sm:$0xff] %v325
    %s329 = scalar_lea.vmem %s0, 192
    %v330 = vld [vmem:[%s329] sm:$0xff]
    %v331 = vlaneseq
    %v332 = vand.u32 %v331, 127
    %vm334 = vcmp.lt.s32.totalorder %v332, 36
    %v335 = vsel %vm334, %v330, %v19
    %s336 = scalar_lea.vmem [#allocation31], 192
    %338 = vst [vmem:[%s336] sm:$0xff] %v335
    %s339 = scalar_lea.vmem %s0, 200
    %v340 = vld [vmem:[%s339] sm:$0xff]
    %v341 = vlaneseq
    %v342 = vand.u32 %v341, 127
    %vm344 = vcmp.lt.s32.totalorder %v342, 36
    %v345 = vsel %vm344, %v340, %v19
    %s346 = scalar_lea.vmem [#allocation31], 200
    %348 = vst [vmem:[%s346] sm:$0xff] %v345
    %s349 = scalar_lea.vmem %s0, 208
    %v350 = vld [vmem:[%s349] sm:$0xff]
    %v351 = vlaneseq
    %v352 = vand.u32 %v351, 127
    %vm354 = vcmp.lt.s32.totalorder %v352, 36
    %v355 = vsel %vm354, %v350, %v19
    %s356 = scalar_lea.vmem [#allocation31], 208
    %358 = vst [vmem:[%s356] sm:$0xff] %v355
    %s359 = scalar_lea.vmem %s0, 216
    %v360 = vld [vmem:[%s359] sm:$0xff]
    %v361 = vlaneseq
    %v362 = vand.u32 %v361, 127
    %vm364 = vcmp.lt.s32.totalorder %v362, 36
    %v365 = vsel %vm364, %v360, %v19
    %s366 = scalar_lea.vmem [#allocation31], 216
    %368 = vst [vmem:[%s366] sm:$0xff] %v365
    %s369 = scalar_lea.vmem %s0, 224
    %v370 = vld [vmem:[%s369] sm:$0xff]
    %v371 = vlaneseq
    %v372 = vand.u32 %v371, 127
    %vm374 = vcmp.lt.s32.totalorder %v372, 36
    %v375 = vsel %vm374, %v370, %v19
    %s376 = scalar_lea.vmem [#allocation31], 224
    %378 = vst [vmem:[%s376] sm:$0xff] %v375
    %s379 = scalar_lea.vmem %s0, 232
    %v380 = vld [vmem:[%s379] sm:$0xff]
    %v381 = vlaneseq
    %v382 = vand.u32 %v381, 127
    %vm384 = vcmp.lt.s32.totalorder %v382, 36
    %v385 = vsel %vm384, %v380, %v19
    %s386 = scalar_lea.vmem [#allocation31], 232
    %388 = vst [vmem:[%s386] sm:$0xff] %v385
    %s389 = scalar_lea.vmem %s0, 240
    %v390 = vld [vmem:[%s389] sm:$0xff]
    %v391 = vlaneseq
    %v392 = vand.u32 %v391, 127
    %vm394 = vcmp.lt.s32.totalorder %v392, 36
    %v395 = vsel %vm394, %v390, %v19
    %s396 = scalar_lea.vmem [#allocation31], 240
    %398 = vst [vmem:[%s396] sm:$0xff] %v395
    %s399 = scalar_lea.vmem %s0, 248
    %v400 = vld [vmem:[%s399] sm:$0xff]
    %v401 = vlaneseq
    %v402 = vand.u32 %v401, 127
    %vm404 = vcmp.lt.s32.totalorder %v402, 36
    %v405 = vsel %vm404, %v400, %v19
    %s406 = scalar_lea.vmem [#allocation31], 248
    %408 = vst [vmem:[%s406] sm:$0xff] %v405
    %s409 = scalar_lea.vmem %s0, 256
    %v410 = vld [vmem:[%s409] sm:$0xff]
    %v411 = vlaneseq
    %v412 = vand.u32 %v411, 127
    %vm414 = vcmp.lt.s32.totalorder %v412, 36
    %v415 = vsel %vm414, %v410, %v19
    %s416 = scalar_lea.vmem [#allocation31], 256
    %418 = vst [vmem:[%s416] sm:$0xff] %v415
    %s419 = scalar_lea.vmem %s0, 264
    %v420 = vld [vmem:[%s419] sm:$0xff]
    %v421 = vlaneseq
    %v422 = vand.u32 %v421, 127
    %vm424 = vcmp.lt.s32.totalorder %v422, 36
    %v425 = vsel %vm424, %v420, %v19
    %s426 = scalar_lea.vmem [#allocation31], 264
    %428 = vst [vmem:[%s426] sm:$0xff] %v425
    %s429 = scalar_lea.vmem %s0, 272
    %v430 = vld [vmem:[%s429] sm:$0xff]
    %v431 = vlaneseq
    %v432 = vand.u32 %v431, 127
    %vm434 = vcmp.lt.s32.totalorder %v432, 36
    %v435 = vsel %vm434, %v430, %v19
    %s436 = scalar_lea.vmem [#allocation31], 272
    %438 = vst [vmem:[%s436] sm:$0xff] %v435
    %s439 = scalar_lea.vmem %s0, 280
    %v440 = vld [vmem:[%s439] sm:$0xff]
    %v441 = vlaneseq
    %v442 = vand.u32 %v441, 127
    %vm444 = vcmp.lt.s32.totalorder %v442, 36
    %v445 = vsel %vm444, %v440, %v19
    %s446 = scalar_lea.vmem [#allocation31], 280
    %448 = vst [vmem:[%s446] sm:$0xff] %v445
    %s449 = scalar_lea.vmem %s0, 288
    %v450 = vld [vmem:[%s449] sm:$0xff]
    %v451 = vlaneseq
    %v452 = vand.u32 %v451, 127
    %vm454 = vcmp.lt.s32.totalorder %v452, 36
    %v455 = vsel %vm454, %v450, %v19
    %s456 = scalar_lea.vmem [#allocation31], 288
    %458 = vst [vmem:[%s456] sm:$0xff] %v455
    %s459 = scalar_lea.vmem %s0, 296
    %v460 = vld [vmem:[%s459] sm:$0xff]
    %v461 = vlaneseq
    %v462 = vand.u32 %v461, 127
    %vm464 = vcmp.lt.s32.totalorder %v462, 36
    %v465 = vsel %vm464, %v460, %v19
    %s466 = scalar_lea.vmem [#allocation31], 296
    %468 = vst [vmem:[%s466] sm:$0xff] %v465
    %s469 = scalar_lea.vmem %s0, 304
    %v470 = vld [vmem:[%s469] sm:$0xff]
    %v471 = vlaneseq
    %v472 = vand.u32 %v471, 127
    %vm474 = vcmp.lt.s32.totalorder %v472, 36
    %v475 = vsel %vm474, %v470, %v19
    %s476 = scalar_lea.vmem [#allocation31], 304
    %478 = vst [vmem:[%s476] sm:$0xff] %v475
    %s479 = scalar_lea.vmem %s0, 312
    %v480 = vld [vmem:[%s479] sm:$0xff]
    %v481 = vlaneseq
    %v482 = vand.u32 %v481, 127
    %vm484 = vcmp.lt.s32.totalorder %v482, 36
    %v485 = vsel %vm484, %v480, %v19
    %s486 = scalar_lea.vmem [#allocation31], 312
    %488 = vst [vmem:[%s486] sm:$0xff] %v485
    %s489 = scalar_lea.vmem %s0, 320
    %v490 = vld [vmem:[%s489] sm:$0xff]
    %v491 = vlaneseq
    %v492 = vand.u32 %v491, 127
    %vm494 = vcmp.lt.s32.totalorder %v492, 36
    %v495 = vsel %vm494, %v490, %v19
    %s496 = scalar_lea.vmem [#allocation31], 320
    %498 = vst [vmem:[%s496] sm:$0xff] %v495
    %s499 = scalar_lea.vmem %s0, 328
    %v500 = vld [vmem:[%s499] sm:$0xff]
    %v501 = vlaneseq
    %v502 = vand.u32 %v501, 127
    %vm504 = vcmp.lt.s32.totalorder %v502, 36
    %v505 = vsel %vm504, %v500, %v19
    %s506 = scalar_lea.vmem [#allocation31], 328
    %508 = vst [vmem:[%s506] sm:$0xff] %v505
    %s509 = scalar_lea.vmem %s0, 336
    %v510 = vld [vmem:[%s509] sm:$0xff]
    %v511 = vlaneseq
    %v512 = vand.u32 %v511, 127
    %vm514 = vcmp.lt.s32.totalorder %v512, 36
    %v515 = vsel %vm514, %v510, %v19
    %s516 = scalar_lea.vmem [#allocation31], 336
    %518 = vst [vmem:[%s516] sm:$0xff] %v515
    %s519 = scalar_lea.vmem %s0, 344
    %v520 = vld [vmem:[%s519] sm:$0xff]
    %v521 = vlaneseq
    %v522 = vand.u32 %v521, 127
    %vm524 = vcmp.lt.s32.totalorder %v522, 36
    %v525 = vsel %vm524, %v520, %v19
    %s526 = scalar_lea.vmem [#allocation31], 344
    %528 = vst [vmem:[%s526] sm:$0xff] %v525
    %s529 = scalar_lea.vmem %s0, 352
    %v530 = vld [vmem:[%s529] sm:$0xff]
    %v531 = vlaneseq
    %v532 = vand.u32 %v531, 127
    %vm534 = vcmp.lt.s32.totalorder %v532, 36
    %v535 = vsel %vm534, %v530, %v19
    %s536 = scalar_lea.vmem [#allocation31], 352
    %538 = vst [vmem:[%s536] sm:$0xff] %v535
    %s539 = scalar_lea.vmem %s0, 360
    %v540 = vld [vmem:[%s539] sm:$0xff]
    %v541 = vlaneseq
    %v542 = vand.u32 %v541, 127
    %vm544 = vcmp.lt.s32.totalorder %v542, 36
    %v545 = vsel %vm544, %v540, %v19
    %s546 = scalar_lea.vmem [#allocation31], 360
    %548 = vst [vmem:[%s546] sm:$0xff] %v545
    %s549 = scalar_lea.vmem %s0, 368
    %v550 = vld [vmem:[%s549] sm:$0xff]
    %v551 = vlaneseq
    %v552 = vand.u32 %v551, 127
    %vm554 = vcmp.lt.s32.totalorder %v552, 36
    %v555 = vsel %vm554, %v550, %v19
    %s556 = scalar_lea.vmem [#allocation31], 368
    %558 = vst [vmem:[%s556] sm:$0xff] %v555
    %s559 = scalar_lea.vmem %s0, 376
    %v560 = vld [vmem:[%s559] sm:$0xff]
    %v561 = vlaneseq
    %v562 = vand.u32 %v561, 127
    %vm564 = vcmp.lt.s32.totalorder %v562, 36
    %v565 = vsel %vm564, %v560, %v19
    %s566 = scalar_lea.vmem [#allocation31], 376
    %568 = vst [vmem:[%s566] sm:$0xff] %v565
    %s569 = scalar_lea.vmem %s0, 384
    %v570 = vld [vmem:[%s569] sm:$0xff]
    %v571 = vlaneseq
    %v572 = vand.u32 %v571, 127
    %vm574 = vcmp.lt.s32.totalorder %v572, 36
    %v575 = vsel %vm574, %v570, %v19
    %s576 = scalar_lea.vmem [#allocation31], 384
    %578 = vst [vmem:[%s576] sm:$0xff] %v575
    %s579 = scalar_lea.vmem %s0, 392
    %v580 = vld [vmem:[%s579] sm:$0xff]
    %v581 = vlaneseq
    %v582 = vand.u32 %v581, 127
    %vm584 = vcmp.lt.s32.totalorder %v582, 36
    %v585 = vsel %vm584, %v580, %v19
    %s586 = scalar_lea.vmem [#allocation31], 392
    %588 = vst [vmem:[%s586] sm:$0xff] %v585
    %s589 = scalar_lea.vmem %s0, 400
    %v590 = vld [vmem:[%s589] sm:$0xff]
    %v591 = vlaneseq
    %v592 = vand.u32 %v591, 127
    %vm594 = vcmp.lt.s32.totalorder %v592, 36
    %v595 = vsel %vm594, %v590, %v19
    %s596 = scalar_lea.vmem [#allocation31], 400
    %598 = vst [vmem:[%s596] sm:$0xff] %v595
    %s599 = scalar_lea.vmem %s0, 408
    %v600 = vld [vmem:[%s599] sm:$0xff]
    %v601 = vlaneseq
    %v602 = vand.u32 %v601, 127
    %vm604 = vcmp.lt.s32.totalorder %v602, 36
    %v605 = vsel %vm604, %v600, %v19
    %s606 = scalar_lea.vmem [#allocation31], 408
    %608 = vst [vmem:[%s606] sm:$0xff] %v605
    %s609 = scalar_lea.vmem %s0, 416
    %v610 = vld [vmem:[%s609] sm:$0xff]
    %v611 = vlaneseq
    %v612 = vand.u32 %v611, 127
    %vm614 = vcmp.lt.s32.totalorder %v612, 36
    %v615 = vsel %vm614, %v610, %v19
    %s616 = scalar_lea.vmem [#allocation31], 416
    %618 = vst [vmem:[%s616] sm:$0xff] %v615
    %s619 = scalar_lea.vmem %s0, 424
    %v620 = vld [vmem:[%s619] sm:$0xff]
    %v621 = vlaneseq
    %v622 = vand.u32 %v621, 127
    %vm624 = vcmp.lt.s32.totalorder %v622, 36
    %v625 = vsel %vm624, %v620, %v19
    %s626 = scalar_lea.vmem [#allocation31], 424
    %628 = vst [vmem:[%s626] sm:$0xff] %v625
    %s629 = scalar_lea.vmem %s0, 432
    %v630 = vld [vmem:[%s629] sm:$0xff]
    %v631 = vlaneseq
    %v632 = vand.u32 %v631, 127
    %vm634 = vcmp.lt.s32.totalorder %v632, 36
    %v635 = vsel %vm634, %v630, %v19
    %s636 = scalar_lea.vmem [#allocation31], 432
    %638 = vst [vmem:[%s636] sm:$0xff] %v635
    %s639 = scalar_lea.vmem %s0, 440
    %v640 = vld [vmem:[%s639] sm:$0xff]
    %v641 = vlaneseq
    %v642 = vand.u32 %v641, 127
    %vm644 = vcmp.lt.s32.totalorder %v642, 36
    %v645 = vsel %vm644, %v640, %v19
    %s646 = scalar_lea.vmem [#allocation31], 440
    %648 = vst [vmem:[%s646] sm:$0xff] %v645
    %s649 = scalar_lea.vmem %s0, 448
    %v650 = vld [vmem:[%s649] sm:$0xff]
    %v651 = vlaneseq
    %v652 = vand.u32 %v651, 127
    %vm654 = vcmp.lt.s32.totalorder %v652, 36
    %v655 = vsel %vm654, %v650, %v19
    %s656 = scalar_lea.vmem [#allocation31], 448
    %658 = vst [vmem:[%s656] sm:$0xff] %v655
    %s659 = scalar_lea.vmem %s0, 456
    %v660 = vld [vmem:[%s659] sm:$0xff]
    %v661 = vlaneseq
    %v662 = vand.u32 %v661, 127
    %vm664 = vcmp.lt.s32.totalorder %v662, 36
    %v665 = vsel %vm664, %v660, %v19
    %s666 = scalar_lea.vmem [#allocation31], 456
    %668 = vst [vmem:[%s666] sm:$0xff] %v665
    %s669 = scalar_lea.vmem %s0, 464
    %v670 = vld [vmem:[%s669] sm:$0xff]
    %v671 = vlaneseq
    %v672 = vand.u32 %v671, 127
    %vm674 = vcmp.lt.s32.totalorder %v672, 36
    %v675 = vsel %vm674, %v670, %v19
    %s676 = scalar_lea.vmem [#allocation31], 464
    %678 = vst [vmem:[%s676] sm:$0xff] %v675
    %s679 = scalar_lea.vmem %s0, 472
    %v680 = vld [vmem:[%s679] sm:$0xff]
    %v681 = vlaneseq
    %v682 = vand.u32 %v681, 127
    %vm684 = vcmp.lt.s32.totalorder %v682, 36
    %v685 = vsel %vm684, %v680, %v19
    %s686 = scalar_lea.vmem [#allocation31], 472
    %688 = vst [vmem:[%s686] sm:$0xff] %v685
    %s689 = scalar_lea.vmem %s0, 480
    %v690 = vld [vmem:[%s689] sm:$0xff]
    %v691 = vlaneseq
    %v692 = vand.u32 %v691, 127
    %vm694 = vcmp.lt.s32.totalorder %v692, 36
    %v695 = vsel %vm694, %v690, %v19
    %s696 = scalar_lea.vmem [#allocation31], 480
    %698 = vst [vmem:[%s696] sm:$0xff] %v695
    %s699 = scalar_lea.vmem %s0, 488
    %v700 = vld [vmem:[%s699] sm:$0xff]
    %v701 = vlaneseq
    %v702 = vand.u32 %v701, 127
    %vm704 = vcmp.lt.s32.totalorder %v702, 36
    %v705 = vsel %vm704, %v700, %v19
    %s706 = scalar_lea.vmem [#allocation31], 488
    %708 = vst [vmem:[%s706] sm:$0xff] %v705
    %s709 = scalar_lea.vmem %s0, 496
    %v710 = vld [vmem:[%s709] sm:$0xff]
    %v711 = vlaneseq
    %v712 = vand.u32 %v711, 127
    %vm714 = vcmp.lt.s32.totalorder %v712, 36
    %v715 = vsel %vm714, %v710, %v19
    %s716 = scalar_lea.vmem [#allocation31], 496
    %718 = vst [vmem:[%s716] sm:$0xff] %v715
    %s719 = scalar_lea.vmem %s0, 504
    %v720 = vld [vmem:[%s719] sm:$0xff]
    %v721 = vlaneseq
    %v722 = vand.u32 %v721, 127
    %vm724 = vcmp.lt.s32.totalorder %v722, 36
    %v725 = vsel %vm724, %v720, %v19
    %s726 = scalar_lea.vmem [#allocation31], 504
    %728 = vst [vmem:[%s726] sm:$0xff] %v725
    %v729 = vld [vmem:[%s9] sm:$0xff]
    %v730 = vlaneseq
    %v731 = vshrl.u32 %v730, 7
    %vm733 = vcmp.lt.s32.totalorder %v731, 36
    %v734 = vsel %vm733, %v729, %v20
    %v735 = vlaneseq
    %v736 = vand.u32 %v735, 127
    %vm738 = vcmp.lt.s32.totalorder %v736, 32
    %v739 = vsel %vm738, %v734, %v20
    %s740 = ssub.s32 0, 0
    %p741 = scmp.lt.s32.totalorder %s740, 0
    %s742 = scalar_select %p741, 0, 255
    %s743 = sand.u32 1, %s742
    %s744 = sand.u32 1, %s743
    %v745 = vld [vmem:[%s78] sm:%s744]
    %v746 = vlaneseq
    %v747 = vshrl.u32 %v746, 7
    %750 = xla_tuple %v747, %v23
    %751 = xla_tuple %750
    %vm752 = vcmp.lt.s32.totalorder %v747, %v23
    %v753 = vsel %vm752, 1, 0
    %754 = xla_tuple %v753
    %755 = xla_tuple %v753, %v739, %v22
    %756 = xla_tuple %755
    %v757 = vsel %vm752, %v739, %v22
    %758 = xla_tuple %v757
    %759 = xla_tuple %v757, %v21
    %760 = xla_tuple %759
    %v761 = vmax.f32 %v757, %v21
    %762 = xla_tuple %v761
    %764 = vst [vmem:[#allocation32] sm:$0xff] %v761
    %s765 = scalar_lea.vmem %s9, 8
    %v766 = vld [vmem:[%s765] sm:$0xff]
    %v767 = vlaneseq
    %v768 = vshrl.u32 %v767, 7
    %v769 = vadd.s32 %v768, 8
    %vm770 = vcmp.lt.s32.totalorder %v769, 36
    %v771 = vsel %vm770, %v766, %v20
    %v772 = vlaneseq
    %v773 = vand.u32 %v772, 127
    %vm775 = vcmp.lt.s32.totalorder %v773, 32
    %v776 = vsel %vm775, %v771, %v20
    %v777 = vlaneseq
    %v778 = vshrl.u32 %v777, 7
    %v780 = vadd.s32 %v778, 8
    %781 = xla_tuple %v780, %v23
    %782 = xla_tuple %781
    %vm783 = vcmp.lt.s32.totalorder %v780, %v23
    %v784 = vsel %vm783, 1, 0
    %785 = xla_tuple %v784
    %786 = xla_tuple %v784, %v776, %v22
    %787 = xla_tuple %786
    %v788 = vsel %vm783, %v776, %v22
    %789 = xla_tuple %v788
    %790 = xla_tuple %v788, %v21
    %791 = xla_tuple %790
    %v792 = vmax.f32 %v788, %v21
    %793 = xla_tuple %v792
    %s794 = scalar_lea.vmem [#allocation32], 8
    %796 = vst [vmem:[%s794] sm:$0xff] %v792
    %s797 = scalar_lea.vmem %s9, 16
    %v798 = vld [vmem:[%s797] sm:$0xff]
    %v799 = vlaneseq
    %v800 = vshrl.u32 %v799, 7
    %v801 = vadd.s32 %v800, 16
    %vm802 = vcmp.lt.s32.totalorder %v801, 36
    %v803 = vsel %vm802, %v798, %v20
    %v804 = vlaneseq
    %v805 = vand.u32 %v804, 127
    %vm807 = vcmp.lt.s32.totalorder %v805, 32
    %v808 = vsel %vm807, %v803, %v20
    %v809 = vlaneseq
    %v810 = vshrl.u32 %v809, 7
    %v812 = vadd.s32 %v810, 16
    %813 = xla_tuple %v812, %v23
    %814 = xla_tuple %813
    %vm815 = vcmp.lt.s32.totalorder %v812, %v23
    %v816 = vsel %vm815, 1, 0
    %817 = xla_tuple %v816
    %818 = xla_tuple %v816, %v808, %v22
    %819 = xla_tuple %818
    %v820 = vsel %vm815, %v808, %v22
    %821 = xla_tuple %v820
    %822 = xla_tuple %v820, %v21
    %823 = xla_tuple %822
    %v824 = vmax.f32 %v820, %v21
    %825 = xla_tuple %v824
    %s826 = scalar_lea.vmem [#allocation32], 16
    %828 = vst [vmem:[%s826] sm:$0xff] %v824
    %s829 = scalar_lea.vmem %s9, 24
    %v830 = vld [vmem:[%s829] sm:$0xff]
    %v831 = vlaneseq
    %v832 = vshrl.u32 %v831, 7
    %v833 = vadd.s32 %v832, 24
    %vm834 = vcmp.lt.s32.totalorder %v833, 36
    %v835 = vsel %vm834, %v830, %v20
    %v836 = vlaneseq
    %v837 = vand.u32 %v836, 127
    %vm839 = vcmp.lt.s32.totalorder %v837, 32
    %v840 = vsel %vm839, %v835, %v20
    %v841 = vlaneseq
    %v842 = vshrl.u32 %v841, 7
    %v844 = vadd.s32 %v842, 24
    %845 = xla_tuple %v844, %v23
    %846 = xla_tuple %845
    %vm847 = vcmp.lt.s32.totalorder %v844, %v23
    %v848 = vsel %vm847, 1, 0
    %849 = xla_tuple %v848
    %850 = xla_tuple %v848, %v840, %v22
    %851 = xla_tuple %850
    %v852 = vsel %vm847, %v840, %v22
    %853 = xla_tuple %v852
    %854 = xla_tuple %v852, %v21
    %855 = xla_tuple %854
    %v856 = vmax.f32 %v852, %v21
    %857 = xla_tuple %v856
    %s858 = scalar_lea.vmem [#allocation32], 24
    %860 = vst [vmem:[%s858] sm:$0xff] %v856
    %s861 = scalar_lea.vmem %s9, 32
    %v862 = vld [vmem:[%s861] sm:$0xff]
    %v863 = vlaneseq
    %v864 = vshrl.u32 %v863, 7
    %v865 = vadd.s32 %v864, 32
    %vm866 = vcmp.lt.s32.totalorder %v865, 36
    %v867 = vsel %vm866, %v862, %v20
    %v868 = vlaneseq
    %v869 = vand.u32 %v868, 127
    %vm871 = vcmp.lt.s32.totalorder %v869, 32
    %v872 = vsel %vm871, %v867, %v20
    %v873 = vlaneseq
    %v874 = vshrl.u32 %v873, 7
    %v875 = vadd.s32 %v874, 40
    %vm876 = vcmp.lt.s32.totalorder %v875, 41
    %v877 = vsel %vm876, %v745, %v21
    %vm878 = vcmask 1043456
    %v879 = vsel %vm878, %v877, %v21
    %v880 = vrot.slane %v879, 4
    %v881 = vlaneseq
    %v882 = vshrl.u32 %v881, 7
    %v884 = vadd.s32 %v882, 32
    %885 = xla_tuple %v884, %v23
    %886 = xla_tuple %885
    %vm887 = vcmp.lt.s32.totalorder %v884, %v23
    %v888 = vsel %vm887, 1, 0
    %889 = xla_tuple %v888
    %890 = xla_tuple %v888, %v872, %v22
    %891 = xla_tuple %890
    %v892 = vsel %vm887, %v872, %v22
    %893 = xla_tuple %v892
    %894 = xla_tuple %v892, %v880
    %895 = xla_tuple %894
    %v896 = vmax.f32 %v892, %v880
    %897 = xla_tuple %v896
    %s898 = scalar_lea.vmem [#allocation32], 32
    %900 = vst [vmem:[%s898] sm:$0xff] %v896
    %s901 = ssub.s32 0, 0
    %p902 = scmp.lt.s32.totalorder %s901, 0
    %s903 = scalar_select %p902, 0, 255
    %s904 = sand.u32 1, %s903
    %s905 = sand.u32 1, %s904
    %v906 = vld [vmem:[%s87] sm:%s905]
    %v907 = vld [vmem:[%s4] sm:$0xff]
    %v908 = vlaneseq
    %v909 = vand.u32 %v908, 127
    %vm911 = vcmp.lt.s32.totalorder %v909, 10
    %v912 = vsel %vm911, %v907, %v25
    %v913 = vld [vmem:[%s8] ss:$0 sm:$0xff]
    %915 = vbcast.lane.b32.xlu0 %v913, 256
    %v916 = vpop.permute.xlu0 %915
    %v917 = vlaneseq
    %v918 = vshrl.u32 %v917, 7
    %921 = xla_tuple %v918, %v28
    %922 = xla_tuple %921
    %vm923 = vcmp.lt.s32.totalorder %v918, %v28
    %v924 = vsel %vm923, 1, 0
    %925 = xla_tuple %v924
    %926 = xla_tuple %v924, %v912, %v27
    %927 = xla_tuple %926
    %v928 = vsel %vm923, %v912, %v27
    %929 = xla_tuple %v928
    %v930 = vlaneseq
    %v931 = vshrl.u32 %v930, 7
    %934 = xla_tuple %v931, %v28
    %935 = xla_tuple %934
    %vm936 = vcmp.ge.s32.totalorder %v931, %v28
    %v937 = vsel %vm936, 1, 0
    %938 = xla_tuple %v937
    %v939 = vlaneseq
    %v940 = vshrl.u32 %v939, 7
    %943 = xla_tuple %v940, %v26
    %944 = xla_tuple %943
    %vm945 = vcmp.lt.s32.totalorder %v940, %v26
    %v946 = vsel %vm945, 1, 0
    %947 = xla_tuple %v946
    %v948 = vand.u32 %v937, %v946
    %949 = xla_tuple %v948, %v24, %v27
    %950 = xla_tuple %949
    %vm951 = vcmp.ne.s32.totalorder %v948, 0
    %v952 = vsel %vm951, %v24, %v27
    %953 = xla_tuple %v952
    %954 = xla_tuple %v928, %v952
    %955 = xla_tuple %954
    %v956 = vmax.f32 %v928, %v952
    %957 = xla_tuple %v956
    %958 = xla_tuple %v956, %v916
    %959 = xla_tuple %958
    %v960 = vmax.f32 %v956, %v916
    %961 = xla_tuple %v960
    %963 = vst [vmem:[#allocation33] sm:$0xff] %v960
    %s964 = scalar_lea.vmem %s4, 8
    %v965 = vld [vmem:[%s964] sm:$0xff]
    %v966 = vlaneseq
    %v967 = vand.u32 %v966, 127
    %vm969 = vcmp.lt.s32.totalorder %v967, 10
    %v970 = vsel %vm969, %v965, %v25
    %v971 = vld [vmem:[%s8] ss:$0 sm:$0xff]
    %s973 = sor.u32 256, 8
    %974 = vbcast.lane.b32.xlu0 %v971, %s973
    %v975 = vpop.permute.xlu0 %974
    %v976 = vlaneseq
    %v977 = vshrl.u32 %v976, 7
    %v979 = vadd.s32 %v977, 8
    %980 = xla_tuple %v979, %v28
    %981 = xla_tuple %980
    %vm982 = vcmp.lt.s32.totalorder %v979, %v28
    %v983 = vsel %vm982, 1, 0
    %984 = xla_tuple %v983
    %985 = xla_tuple %v983, %v970, %v27
    %986 = xla_tuple %985
    %v987 = vsel %vm982, %v970, %v27
    %988 = xla_tuple %v987
    %v989 = vlaneseq
    %v990 = vshrl.u32 %v989, 7
    %v992 = vadd.s32 %v990, 8
    %993 = xla_tuple %v992, %v28
    %994 = xla_tuple %993
    %vm995 = vcmp.ge.s32.totalorder %v992, %v28
    %v996 = vsel %vm995, 1, 0
    %997 = xla_tuple %v996
    %v998 = vlaneseq
    %v999 = vshrl.u32 %v998, 7
    %v1001 = vadd.s32 %v999, 8
    %1002 = xla_tuple %v1001, %v26
    %1003 = xla_tuple %1002
    %vm1004 = vcmp.lt.s32.totalorder %v1001, %v26
    %v1005 = vsel %vm1004, 1, 0
    %1006 = xla_tuple %v1005
    %v1007 = vand.u32 %v996, %v1005
    %1008 = xla_tuple %v1007, %v24, %v27
    %1009 = xla_tuple %1008
    %vm1010 = vcmp.ne.s32.totalorder %v1007, 0
    %v1011 = vsel %vm1010, %v24, %v27
    %1012 = xla_tuple %v1011
    %1013 = xla_tuple %v987, %v1011
    %1014 = xla_tuple %1013
    %v1015 = vmax.f32 %v987, %v1011
    %1016 = xla_tuple %v1015
    %1017 = xla_tuple %v1015, %v975
    %1018 = xla_tuple %1017
    %v1019 = vmax.f32 %v1015, %v975
    %1020 = xla_tuple %v1019
    %s1021 = scalar_lea.vmem [#allocation33], 8
    %1023 = vst [vmem:[%s1021] sm:$0xff] %v1019
    %s1024 = scalar_lea.vmem %s4, 16
    %v1025 = vld [vmem:[%s1024] sm:$0xff]
    %v1026 = vlaneseq
    %v1027 = vand.u32 %v1026, 127
    %vm1029 = vcmp.lt.s32.totalorder %v1027, 10
    %v1030 = vsel %vm1029, %v1025, %v25
    %v1031 = vld [vmem:[%s8] ss:$0 sm:$0xff]
    %s1033 = sor.u32 256, 16
    %1034 = vbcast.lane.b32.xlu0 %v1031, %s1033
    %v1035 = vpop.permute.xlu0 %1034
    %v1036 = vlaneseq
    %v1037 = vshrl.u32 %v1036, 7
    %v1039 = vadd.s32 %v1037, 16
    %1040 = xla_tuple %v1039, %v28
    %1041 = xla_tuple %1040
    %vm1042 = vcmp.lt.s32.totalorder %v1039, %v28
    %v1043 = vsel %vm1042, 1, 0
    %1044 = xla_tuple %v1043
    %1045 = xla_tuple %v1043, %v1030, %v27
    %1046 = xla_tuple %1045
    %v1047 = vsel %vm1042, %v1030, %v27
    %1048 = xla_tuple %v1047
    %v1049 = vlaneseq
    %v1050 = vshrl.u32 %v1049, 7
    %v1052 = vadd.s32 %v1050, 16
    %1053 = xla_tuple %v1052, %v28
    %1054 = xla_tuple %1053
    %vm1055 = vcmp.ge.s32.totalorder %v1052, %v28
    %v1056 = vsel %vm1055, 1, 0
    %1057 = xla_tuple %v1056
    %v1058 = vlaneseq
    %v1059 = vshrl.u32 %v1058, 7
    %v1061 = vadd.s32 %v1059, 16
    %1062 = xla_tuple %v1061, %v26
    %1063 = xla_tuple %1062
    %vm1064 = vcmp.lt.s32.totalorder %v1061, %v26
    %v1065 = vsel %vm1064, 1, 0
    %1066 = xla_tuple %v1065
    %v1067 = vand.u32 %v1056, %v1065
    %1068 = xla_tuple %v1067, %v24, %v27
    %1069 = xla_tuple %1068
    %vm1070 = vcmp.ne.s32.totalorder %v1067, 0
    %v1071 = vsel %vm1070, %v24, %v27
    %1072 = xla_tuple %v1071
    %1073 = xla_tuple %v1047, %v1071
    %1074 = xla_tuple %1073
    %v1075 = vmax.f32 %v1047, %v1071
    %1076 = xla_tuple %v1075
    %1077 = xla_tuple %v1075, %v1035
    %1078 = xla_tuple %1077
    %v1079 = vmax.f32 %v1075, %v1035
    %1080 = xla_tuple %v1079
    %s1081 = scalar_lea.vmem [#allocation33], 16
    %1083 = vst [vmem:[%s1081] sm:$0xff] %v1079
    %s1084 = scalar_lea.vmem %s4, 24
    %v1085 = vld [vmem:[%s1084] sm:$0xff]
    %v1086 = vlaneseq
    %v1087 = vand.u32 %v1086, 127
    %vm1089 = vcmp.lt.s32.totalorder %v1087, 10
    %v1090 = vsel %vm1089, %v1085, %v25
    %v1091 = vld [vmem:[%s8] ss:$0 sm:$0xff]
    %s1093 = sor.u32 256, 24
    %1094 = vbcast.lane.b32.xlu0 %v1091, %s1093
    %v1095 = vpop.permute.xlu0 %1094
    %v1096 = vlaneseq
    %v1097 = vshrl.u32 %v1096, 7
    %v1099 = vadd.s32 %v1097, 24
    %1100 = xla_tuple %v1099, %v28
    %1101 = xla_tuple %1100
    %vm1102 = vcmp.lt.s32.totalorder %v1099, %v28
    %v1103 = vsel %vm1102, 1, 0
    %1104 = xla_tuple %v1103
    %1105 = xla_tuple %v1103, %v1090, %v27
    %1106 = xla_tuple %1105
    %v1107 = vsel %vm1102, %v1090, %v27
    %1108 = xla_tuple %v1107
    %v1109 = vlaneseq
    %v1110 = vshrl.u32 %v1109, 7
    %v1112 = vadd.s32 %v1110, 24
    %1113 = xla_tuple %v1112, %v28
    %1114 = xla_tuple %1113
    %vm1115 = vcmp.ge.s32.totalorder %v1112, %v28
    %v1116 = vsel %vm1115, 1, 0
    %1117 = xla_tuple %v1116
    %v1118 = vlaneseq
    %v1119 = vshrl.u32 %v1118, 7
    %v1121 = vadd.s32 %v1119, 24
    %1122 = xla_tuple %v1121, %v26
    %1123 = xla_tuple %1122
    %vm1124 = vcmp.lt.s32.totalorder %v1121, %v26
    %v1125 = vsel %vm1124, 1, 0
    %1126 = xla_tuple %v1125
    %v1127 = vand.u32 %v1116, %v1125
    %1128 = xla_tuple %v1127, %v24, %v27
    %1129 = xla_tuple %1128
    %vm1130 = vcmp.ne.s32.totalorder %v1127, 0
    %v1131 = vsel %vm1130, %v24, %v27
    %1132 = xla_tuple %v1131
    %1133 = xla_tuple %v1107, %v1131
    %1134 = xla_tuple %1133
    %v1135 = vmax.f32 %v1107, %v1131
    %1136 = xla_tuple %v1135
    %1137 = xla_tuple %v1135, %v1095
    %1138 = xla_tuple %1137
    %v1139 = vmax.f32 %v1135, %v1095
    %1140 = xla_tuple %v1139
    %s1141 = scalar_lea.vmem [#allocation33], 24
    %1143 = vst [vmem:[%s1141] sm:$0xff] %v1139
    %v1144 = vlaneseq
    %v1145 = vshrl.u32 %v1144, 7
    %v1146 = vadd.s32 %v1145, 32
    %vm1147 = vcmp.lt.s32.totalorder %v1146, 33
    %v1148 = vsel %vm1147, %v906, %v24
    %v1149 = vlaneseq
    %v1150 = vand.u32 %v1149, 127
    %vm1152 = vcmp.lt.s32.totalorder %v1150, 10
    %v1153 = vsel %vm1152, %v1148, %v24
    %v1154 = vld [vmem:[%s8] ss:$0 sm:$0xff]
    %s1156 = sor.u32 256, 32
    %1157 = vbcast.lane.b32.xlu0 %v1154, %s1156
    %v1158 = vpop.permute.xlu0 %1157
    %v1159 = vlaneseq
    %v1160 = vshrl.u32 %v1159, 7
    %v1162 = vadd.s32 %v1160, 32
    %1163 = xla_tuple %v1162, %v28
    %1164 = xla_tuple %1163
    %vm1165 = vcmp.lt.s32.totalorder %v1162, %v28
    %v1166 = vsel %vm1165, 1, 0
    %1167 = xla_tuple %v1166
    %1168 = xla_tuple %v1166, %v25, %v27
    %1169 = xla_tuple %1168
    %v1170 = vsel %vm1165, %v25, %v27
    %1171 = xla_tuple %v1170
    %v1172 = vlaneseq
    %v1173 = vshrl.u32 %v1172, 7
    %v1175 = vadd.s32 %v1173, 32
    %1176 = xla_tuple %v1175, %v28
    %1177 = xla_tuple %1176
    %vm1178 = vcmp.ge.s32.totalorder %v1175, %v28
    %v1179 = vsel %vm1178, 1, 0
    %1180 = xla_tuple %v1179
    %v1181 = vlaneseq
    %v1182 = vshrl.u32 %v1181, 7
    %v1184 = vadd.s32 %v1182, 32
    %1185 = xla_tuple %v1184, %v26
    %1186 = xla_tuple %1185
    %vm1187 = vcmp.lt.s32.totalorder %v1184, %v26
    %v1188 = vsel %vm1187, 1, 0
    %1189 = xla_tuple %v1188
    %v1190 = vand.u32 %v1179, %v1188
    %1191 = xla_tuple %v1190, %v1153, %v27
    %1192 = xla_tuple %1191
    %vm1193 = vcmp.ne.s32.totalorder %v1190, 0
    %v1194 = vsel %vm1193, %v1153, %v27
    %1195 = xla_tuple %v1194
    %1196 = xla_tuple %v1170, %v1194
    %1197 = xla_tuple %1196
    %v1198 = vmax.f32 %v1170, %v1194
    %1199 = xla_tuple %v1198
    %1200 = xla_tuple %v1198, %v1158
    %1201 = xla_tuple %1200
    %v1202 = vmax.f32 %v1198, %v1158
    %1203 = xla_tuple %v1202
    %s1204 = scalar_lea.vmem [#allocation33], 32
    %1206 = vst [vmem:[%s1204] sm:$0xff] %v1202
    %v1207 = vld [vmem:[%s8] ss:$0 sm:$0xff]
    %s1209 = sor.u32 256, 40
    %1210 = vbcast.lane.b32.xlu0 %v1207, %s1209
    %v1211 = vpop.permute.xlu0 %1210
    %v1212 = vlaneseq
    %v1213 = vshrl.u32 %v1212, 7
    %v1215 = vadd.s32 %v1213, 40
    %1216 = xla_tuple %v1215, %v28
    %1217 = xla_tuple %1216
    %vm1218 = vcmp.lt.s32.totalorder %v1215, %v28
    %v1219 = vsel %vm1218, 1, 0
    %1220 = xla_tuple %v1219
    %1221 = xla_tuple %v1219, %v25, %v27
    %1222 = xla_tuple %1221
    %v1223 = vsel %vm1218, %v25, %v27
    %1224 = xla_tuple %v1223
    %v1225 = vlaneseq
    %v1226 = vshrl.u32 %v1225, 7
    %v1228 = vadd.s32 %v1226, 40
    %1229 = xla_tuple %v1228, %v28
    %1230 = xla_tuple %1229
    %vm1231 = vcmp.ge.s32.totalorder %v1228, %v28
    %v1232 = vsel %vm1231, 1, 0
    %1233 = xla_tuple %v1232
    %v1234 = vlaneseq
    %v1235 = vshrl.u32 %v1234, 7
    %v1237 = vadd.s32 %v1235, 40
    %1238 = xla_tuple %v1237, %v26
    %1239 = xla_tuple %1238
    %vm1240 = vcmp.lt.s32.totalorder %v1237, %v26
    %v1241 = vsel %vm1240, 1, 0
    %1242 = xla_tuple %v1241
    %v1243 = vand.u32 %v1232, %v1241
    %1244 = xla_tuple %v1243, %v24, %v27
    %1245 = xla_tuple %1244
    %vm1246 = vcmp.ne.s32.totalorder %v1243, 0
    %v1247 = vsel %vm1246, %v24, %v27
    %1248 = xla_tuple %v1247
    %1249 = xla_tuple %v1223, %v1247
    %1250 = xla_tuple %1249
    %v1251 = vmax.f32 %v1223, %v1247
    %1252 = xla_tuple %v1251
    %1253 = xla_tuple %v1251, %v1211
    %1254 = xla_tuple %1253
    %v1255 = vmax.f32 %v1251, %v1211
    %1256 = xla_tuple %v1255
    %s1257 = scalar_lea.vmem [#allocation33], 40
    %1259 = vst [vmem:[%s1257] sm:$0xff] %v1255
    %v1260 = vld [vmem:[%s8] ss:$0 sm:$0xff]
    %s1262 = sor.u32 256, 48
    %1263 = vbcast.lane.b32.xlu0 %v1260, %s1262
    %v1264 = vpop.permute.xlu0 %1263
    %v1265 = vlaneseq
    %v1266 = vshrl.u32 %v1265, 7
    %v1268 = vadd.s32 %v1266, 48
    %1269 = xla_tuple %v1268, %v28
    %1270 = xla_tuple %1269
    %vm1271 = vcmp.lt.s32.totalorder %v1268, %v28
    %v1272 = vsel %vm1271, 1, 0
    %1273 = xla_tuple %v1272
    %1274 = xla_tuple %v1272, %v25, %v27
    %1275 = xla_tuple %1274
    %v1276 = vsel %vm1271, %v25, %v27
    %1277 = xla_tuple %v1276
    %v1278 = vlaneseq
    %v1279 = vshrl.u32 %v1278, 7
    %v1281 = vadd.s32 %v1279, 48
    %1282 = xla_tuple %v1281, %v28
    %1283 = xla_tuple %1282
    %vm1284 = vcmp.ge.s32.totalorder %v1281, %v28
    %v1285 = vsel %vm1284, 1, 0
    %1286 = xla_tuple %v1285
    %v1287 = vlaneseq
    %v1288 = vshrl.u32 %v1287, 7
    %v1290 = vadd.s32 %v1288, 48
    %1291 = xla_tuple %v1290, %v26
    %1292 = xla_tuple %1291
    %vm1293 = vcmp.lt.s32.totalorder %v1290, %v26
    %v1294 = vsel %vm1293, 1, 0
    %1295 = xla_tuple %v1294
    %v1296 = vand.u32 %v1285, %v1294
    %1297 = xla_tuple %v1296, %v24, %v27
    %1298 = xla_tuple %1297
    %vm1299 = vcmp.ne.s32.totalorder %v1296, 0
    %v1300 = vsel %vm1299, %v24, %v27
    %1301 = xla_tuple %v1300
    %1302 = xla_tuple %v1276, %v1300
    %1303 = xla_tuple %1302
    %v1304 = vmax.f32 %v1276, %v1300
    %1305 = xla_tuple %v1304
    %1306 = xla_tuple %v1304, %v1264
    %1307 = xla_tuple %1306
    %v1308 = vmax.f32 %v1304, %v1264
    %1309 = xla_tuple %v1308
    %s1310 = scalar_lea.vmem [#allocation33], 48
    %1312 = vst [vmem:[%s1310] sm:$0xff] %v1308
    %v1313 = vld [vmem:[%s8] ss:$0 sm:$0xff]
    %s1315 = sor.u32 256, 56
    %1316 = vbcast.lane.b32.xlu0 %v1313, %s1315
    %v1317 = vpop.permute.xlu0 %1316
    %v1318 = vlaneseq
    %v1319 = vshrl.u32 %v1318, 7
    %v1321 = vadd.s32 %v1319, 56
    %1322 = xla_tuple %v1321, %v28
    %1323 = xla_tuple %1322
    %vm1324 = vcmp.lt.s32.totalorder %v1321, %v28
    %v1325 = vsel %vm1324, 1, 0
    %1326 = xla_tuple %v1325
    %1327 = xla_tuple %v1325, %v25, %v27
    %1328 = xla_tuple %1327
    %v1329 = vsel %vm1324, %v25, %v27
    %1330 = xla_tuple %v1329
    %v1331 = vlaneseq
    %v1332 = vshrl.u32 %v1331, 7
    %v1334 = vadd.s32 %v1332, 56
    %1335 = xla_tuple %v1334, %v28
    %1336 = xla_tuple %1335
    %vm1337 = vcmp.ge.s32.totalorder %v1334, %v28
    %v1338 = vsel %vm1337, 1, 0
    %1339 = xla_tuple %v1338
    %v1340 = vlaneseq
    %v1341 = vshrl.u32 %v1340, 7
    %v1343 = vadd.s32 %v1341, 56
    %1344 = xla_tuple %v1343, %v26
    %1345 = xla_tuple %1344
    %vm1346 = vcmp.lt.s32.totalorder %v1343, %v26
    %v1347 = vsel %vm1346, 1, 0
    %1348 = xla_tuple %v1347
    %v1349 = vand.u32 %v1338, %v1347
    %1350 = xla_tuple %v1349, %v24, %v27
    %1351 = xla_tuple %1350
    %vm1352 = vcmp.ne.s32.totalorder %v1349, 0
    %v1353 = vsel %vm1352, %v24, %v27
    %1354 = xla_tuple %v1353
    %1355 = xla_tuple %v1329, %v1353
    %1356 = xla_tuple %1355
    %v1357 = vmax.f32 %v1329, %v1353
    %1358 = xla_tuple %v1357
    %1359 = xla_tuple %v1357, %v1317
    %1360 = xla_tuple %1359
    %v1361 = vmax.f32 %v1357, %v1317
    %1362 = xla_tuple %v1361
    %s1363 = scalar_lea.vmem [#allocation33], 56
    %1365 = vst [vmem:[%s1363] sm:$0xff] %v1361
    %v1366 = vld [vmem:[%s8] ss:$0 sm:$0xff]
    %s1368 = sor.u32 256, 64
    %1369 = vbcast.lane.b32.xlu0 %v1366, %s1368
    %v1370 = vpop.permute.xlu0 %1369
    %v1371 = vlaneseq
    %v1372 = vshrl.u32 %v1371, 7
    %v1374 = vadd.s32 %v1372, 64
    %1375 = xla_tuple %v1374, %v28
    %1376 = xla_tuple %1375
    %vm1377 = vcmp.lt.s32.totalorder %v1374, %v28
    %v1378 = vsel %vm1377, 1, 0
    %1379 = xla_tuple %v1378
    %1380 = xla_tuple %v1378, %v25, %v27
    %1381 = xla_tuple %1380
    %v1382 = vsel %vm1377, %v25, %v27
    %1383 = xla_tuple %v1382
    %v1384 = vlaneseq
    %v1385 = vshrl.u32 %v1384, 7
    %v1387 = vadd.s32 %v1385, 64
    %1388 = xla_tuple %v1387, %v28
    %1389 = xla_tuple %1388
    %vm1390 = vcmp.ge.s32.totalorder %v1387, %v28
    %v1391 = vsel %vm1390, 1, 0
    %1392 = xla_tuple %v1391
    %v1393 = vlaneseq
    %v1394 = vshrl.u32 %v1393, 7
    %v1396 = vadd.s32 %v1394, 64
    %1397 = xla_tuple %v1396, %v26
    %1398 = xla_tuple %1397
    %vm1399 = vcmp.lt.s32.totalorder %v1396, %v26
    %v1400 = vsel %vm1399, 1, 0
    %1401 = xla_tuple %v1400
    %v1402 = vand.u32 %v1391, %v1400
    %1403 = xla_tuple %v1402, %v24, %v27
    %1404 = xla_tuple %1403
    %vm1405 = vcmp.ne.s32.totalorder %v1402, 0
    %v1406 = vsel %vm1405, %v24, %v27
    %1407 = xla_tuple %v1406
    %1408 = xla_tuple %v1382, %v1406
    %1409 = xla_tuple %1408
    %v1410 = vmax.f32 %v1382, %v1406
    %1411 = xla_tuple %v1410
    %1412 = xla_tuple %v1410, %v1370
    %1413 = xla_tuple %1412
    %v1414 = vmax.f32 %v1410, %v1370
    %1415 = xla_tuple %v1414
    %s1416 = scalar_lea.vmem [#allocation33], 64
    %1418 = vst [vmem:[%s1416] sm:$0xff] %v1414
    %v1419 = vld [vmem:[%s8] ss:$0 sm:$0xff]
    %s1421 = sor.u32 256, 72
    %1422 = vbcast.lane.b32.xlu0 %v1419, %s1421
    %v1423 = vpop.permute.xlu0 %1422
    %v1424 = vlaneseq
    %v1425 = vshrl.u32 %v1424, 7
    %v1427 = vadd.s32 %v1425, 72
    %1428 = xla_tuple %v1427, %v28
    %1429 = xla_tuple %1428
    %vm1430 = vcmp.lt.s32.totalorder %v1427, %v28
    %v1431 = vsel %vm1430, 1, 0
    %1432 = xla_tuple %v1431
    %1433 = xla_tuple %v1431, %v25, %v27
    %1434 = xla_tuple %1433
    %v1435 = vsel %vm1430, %v25, %v27
    %1436 = xla_tuple %v1435
    %v1437 = vlaneseq
    %v1438 = vshrl.u32 %v1437, 7
    %v1440 = vadd.s32 %v1438, 72
    %1441 = xla_tuple %v1440, %v28
    %1442 = xla_tuple %1441
    %vm1443 = vcmp.ge.s32.totalorder %v1440, %v28
    %v1444 = vsel %vm1443, 1, 0
    %1445 = xla_tuple %v1444
    %v1446 = vlaneseq
    %v1447 = vshrl.u32 %v1446, 7
    %v1449 = vadd.s32 %v1447, 72
    %1450 = xla_tuple %v1449, %v26
    %1451 = xla_tuple %1450
    %vm1452 = vcmp.lt.s32.totalorder %v1449, %v26
    %v1453 = vsel %vm1452, 1, 0
    %1454 = xla_tuple %v1453
    %v1455 = vand.u32 %v1444, %v1453
    %1456 = xla_tuple %v1455, %v24, %v27
    %1457 = xla_tuple %1456
    %vm1458 = vcmp.ne.s32.totalorder %v1455, 0
    %v1459 = vsel %vm1458, %v24, %v27
    %1460 = xla_tuple %v1459
    %1461 = xla_tuple %v1435, %v1459
    %1462 = xla_tuple %1461
    %v1463 = vmax.f32 %v1435, %v1459
    %1464 = xla_tuple %v1463
    %1465 = xla_tuple %v1463, %v1423
    %1466 = xla_tuple %1465
    %v1467 = vmax.f32 %v1463, %v1423
    %1468 = xla_tuple %v1467
    %s1469 = scalar_lea.vmem [#allocation33], 72
    %1471 = vst [vmem:[%s1469] sm:$0xff] %v1467
    %v1472 = vld [vmem:[%s8] ss:$0 sm:$0xff]
    %s1474 = sor.u32 256, 80
    %1475 = vbcast.lane.b32.xlu0 %v1472, %s1474
    %v1476 = vpop.permute.xlu0 %1475
    %v1477 = vlaneseq
    %v1478 = vshrl.u32 %v1477, 7
    %v1480 = vadd.s32 %v1478, 80
    %1481 = xla_tuple %v1480, %v28
    %1482 = xla_tuple %1481
    %vm1483 = vcmp.lt.s32.totalorder %v1480, %v28
    %v1484 = vsel %vm1483, 1, 0
    %1485 = xla_tuple %v1484
    %1486 = xla_tuple %v1484, %v25, %v27
    %1487 = xla_tuple %1486
    %v1488 = vsel %vm1483, %v25, %v27
    %1489 = xla_tuple %v1488
    %v1490 = vlaneseq
    %v1491 = vshrl.u32 %v1490, 7
    %v1493 = vadd.s32 %v1491, 80
    %1494 = xla_tuple %v1493, %v28
    %1495 = xla_tuple %1494
    %vm1496 = vcmp.ge.s32.totalorder %v1493, %v28
    %v1497 = vsel %vm1496, 1, 0
    %1498 = xla_tuple %v1497
    %v1499 = vlaneseq
    %v1500 = vshrl.u32 %v1499, 7
    %v1502 = vadd.s32 %v1500, 80
    %1503 = xla_tuple %v1502, %v26
    %1504 = xla_tuple %1503
    %vm1505 = vcmp.lt.s32.totalorder %v1502, %v26
    %v1506 = vsel %vm1505, 1, 0
    %1507 = xla_tuple %v1506
    %v1508 = vand.u32 %v1497, %v1506
    %1509 = xla_tuple %v1508, %v24, %v27
    %1510 = xla_tuple %1509
    %vm1511 = vcmp.ne.s32.totalorder %v1508, 0
    %v1512 = vsel %vm1511, %v24, %v27
    %1513 = xla_tuple %v1512
    %1514 = xla_tuple %v1488, %v1512
    %1515 = xla_tuple %1514
    %v1516 = vmax.f32 %v1488, %v1512
    %1517 = xla_tuple %v1516
    %1518 = xla_tuple %v1516, %v1476
    %1519 = xla_tuple %1518
    %v1520 = vmax.f32 %v1516, %v1476
    %1521 = xla_tuple %v1520
    %s1522 = scalar_lea.vmem [#allocation33], 80
    %1524 = vst [vmem:[%s1522] sm:$0xff] %v1520
    %v1525 = vld [vmem:[%s8] ss:$0 sm:$0xff]
    %s1527 = sor.u32 256, 88
    %1528 = vbcast.lane.b32.xlu0 %v1525, %s1527
    %v1529 = vpop.permute.xlu0 %1528
    %v1530 = vlaneseq
    %v1531 = vshrl.u32 %v1530, 7
    %v1533 = vadd.s32 %v1531, 88
    %1534 = xla_tuple %v1533, %v28
    %1535 = xla_tuple %1534
    %vm1536 = vcmp.lt.s32.totalorder %v1533, %v28
    %v1537 = vsel %vm1536, 1, 0
    %1538 = xla_tuple %v1537
    %1539 = xla_tuple %v1537, %v25, %v27
    %1540 = xla_tuple %1539
    %v1541 = vsel %vm1536, %v25, %v27
    %1542 = xla_tuple %v1541
    %v1543 = vlaneseq
    %v1544 = vshrl.u32 %v1543, 7
    %v1546 = vadd.s32 %v1544, 88
    %1547 = xla_tuple %v1546, %v28
    %1548 = xla_tuple %1547
    %vm1549 = vcmp.ge.s32.totalorder %v1546, %v28
    %v1550 = vsel %vm1549, 1, 0
    %1551 = xla_tuple %v1550
    %v1552 = vlaneseq
    %v1553 = vshrl.u32 %v1552, 7
    %v1555 = vadd.s32 %v1553, 88
    %1556 = xla_tuple %v1555, %v26
    %1557 = xla_tuple %1556
    %vm1558 = vcmp.lt.s32.totalorder %v1555, %v26
    %v1559 = vsel %vm1558, 1, 0
    %1560 = xla_tuple %v1559
    %v1561 = vand.u32 %v1550, %v1559
    %1562 = xla_tuple %v1561, %v24, %v27
    %1563 = xla_tuple %1562
    %vm1564 = vcmp.ne.s32.totalorder %v1561, 0
    %v1565 = vsel %vm1564, %v24, %v27
    %1566 = xla_tuple %v1565
    %1567 = xla_tuple %v1541, %v1565
    %1568 = xla_tuple %1567
    %v1569 = vmax.f32 %v1541, %v1565
    %1570 = xla_tuple %v1569
    %1571 = xla_tuple %v1569, %v1529
    %1572 = xla_tuple %1571
    %v1573 = vmax.f32 %v1569, %v1529
    %1574 = xla_tuple %v1573
    %s1575 = scalar_lea.vmem [#allocation33], 88
    %1577 = vst [vmem:[%s1575] sm:$0xff] %v1573
    %v1578 = vld [vmem:[%s8] ss:$0 sm:$0xff]
    %s1580 = sor.u32 256, 96
    %1581 = vbcast.lane.b32.xlu0 %v1578, %s1580
    %v1582 = vpop.permute.xlu0 %1581
    %v1583 = vlaneseq
    %v1584 = vshrl.u32 %v1583, 7
    %v1586 = vadd.s32 %v1584, 96
    %1587 = xla_tuple %v1586, %v28
    %1588 = xla_tuple %1587
    %vm1589 = vcmp.lt.s32.totalorder %v1586, %v28
    %v1590 = vsel %vm1589, 1, 0
    %1591 = xla_tuple %v1590
    %1592 = xla_tuple %v1590, %v25, %v27
    %1593 = xla_tuple %1592
    %v1594 = vsel %vm1589, %v25, %v27
    %1595 = xla_tuple %v1594
    %v1596 = vlaneseq
    %v1597 = vshrl.u32 %v1596, 7
    %v1599 = vadd.s32 %v1597, 96
    %1600 = xla_tuple %v1599, %v28
    %1601 = xla_tuple %1600
    %vm1602 = vcmp.ge.s32.totalorder %v1599, %v28
    %v1603 = vsel %vm1602, 1, 0
    %1604 = xla_tuple %v1603
    %v1605 = vlaneseq
    %v1606 = vshrl.u32 %v1605, 7
    %v1608 = vadd.s32 %v1606, 96
    %1609 = xla_tuple %v1608, %v26
    %1610 = xla_tuple %1609
    %vm1611 = vcmp.lt.s32.totalorder %v1608, %v26
    %v1612 = vsel %vm1611, 1, 0
    %1613 = xla_tuple %v1612
    %v1614 = vand.u32 %v1603, %v1612
    %1615 = xla_tuple %v1614, %v24, %v27
    %1616 = xla_tuple %1615
    %vm1617 = vcmp.ne.s32.totalorder %v1614, 0
    %v1618 = vsel %vm1617, %v24, %v27
    %1619 = xla_tuple %v1618
    %1620 = xla_tuple %v1594, %v1618
    %1621 = xla_tuple %1620
    %v1622 = vmax.f32 %v1594, %v1618
    %1623 = xla_tuple %v1622
    %1624 = xla_tuple %v1622, %v1582
    %1625 = xla_tuple %1624
    %v1626 = vmax.f32 %v1622, %v1582
    %1627 = xla_tuple %v1626
    %s1628 = scalar_lea.vmem [#allocation33], 96
    %1630 = vst [vmem:[%s1628] sm:$0xff] %v1626
    %v1631 = vld [vmem:[%s8] ss:$0 sm:$0xff]
    %s1633 = sor.u32 256, 104
    %1634 = vbcast.lane.b32.xlu0 %v1631, %s1633
    %v1635 = vpop.permute.xlu0 %1634
    %v1636 = vlaneseq
    %v1637 = vshrl.u32 %v1636, 7
    %v1639 = vadd.s32 %v1637, 104
    %1640 = xla_tuple %v1639, %v28
    %1641 = xla_tuple %1640
    %vm1642 = vcmp.lt.s32.totalorder %v1639, %v28
    %v1643 = vsel %vm1642, 1, 0
    %1644 = xla_tuple %v1643
    %1645 = xla_tuple %v1643, %v25, %v27
    %1646 = xla_tuple %1645
    %v1647 = vsel %vm1642, %v25, %v27
    %1648 = xla_tuple %v1647
    %v1649 = vlaneseq
    %v1650 = vshrl.u32 %v1649, 7
    %v1652 = vadd.s32 %v1650, 104
    %1653 = xla_tuple %v1652, %v28
    %1654 = xla_tuple %1653
    %vm1655 = vcmp.ge.s32.totalorder %v1652, %v28
    %v1656 = vsel %vm1655, 1, 0
    %1657 = xla_tuple %v1656
    %v1658 = vlaneseq
    %v1659 = vshrl.u32 %v1658, 7
    %v1661 = vadd.s32 %v1659, 104
    %1662 = xla_tuple %v1661, %v26
    %1663 = xla_tuple %1662
    %vm1664 = vcmp.lt.s32.totalorder %v1661, %v26
    %v1665 = vsel %vm1664, 1, 0
    %1666 = xla_tuple %v1665
    %v1667 = vand.u32 %v1656, %v1665
    %1668 = xla_tuple %v1667, %v24, %v27
    %1669 = xla_tuple %1668
    %vm1670 = vcmp.ne.s32.totalorder %v1667, 0
    %v1671 = vsel %vm1670, %v24, %v27
    %1672 = xla_tuple %v1671
    %1673 = xla_tuple %v1647, %v1671
    %1674 = xla_tuple %1673
    %v1675 = vmax.f32 %v1647, %v1671
    %1676 = xla_tuple %v1675
    %1677 = xla_tuple %v1675, %v1635
    %1678 = xla_tuple %1677
    %v1679 = vmax.f32 %v1675, %v1635
    %1680 = xla_tuple %v1679
    %s1681 = scalar_lea.vmem [#allocation33], 104
    %1683 = vst [vmem:[%s1681] sm:$0xff] %v1679
    %v1684 = vld [vmem:[%s8] ss:$0 sm:$0xff]
    %s1686 = sor.u32 256, 112
    %1687 = vbcast.lane.b32.xlu0 %v1684, %s1686
    %v1688 = vpop.permute.xlu0 %1687
    %v1689 = vlaneseq
    %v1690 = vshrl.u32 %v1689, 7
    %v1692 = vadd.s32 %v1690, 112
    %1693 = xla_tuple %v1692, %v28
    %1694 = xla_tuple %1693
    %vm1695 = vcmp.lt.s32.totalorder %v1692, %v28
    %v1696 = vsel %vm1695, 1, 0
    %1697 = xla_tuple %v1696
    %1698 = xla_tuple %v1696, %v25, %v27
    %1699 = xla_tuple %1698
    %v1700 = vsel %vm1695, %v25, %v27
    %1701 = xla_tuple %v1700
    %v1702 = vlaneseq
    %v1703 = vshrl.u32 %v1702, 7
    %v1705 = vadd.s32 %v1703, 112
    %1706 = xla_tuple %v1705, %v28
    %1707 = xla_tuple %1706
    %vm1708 = vcmp.ge.s32.totalorder %v1705, %v28
    %v1709 = vsel %vm1708, 1, 0
    %1710 = xla_tuple %v1709
    %v1711 = vlaneseq
    %v1712 = vshrl.u32 %v1711, 7
    %v1714 = vadd.s32 %v1712, 112
    %1715 = xla_tuple %v1714, %v26
    %1716 = xla_tuple %1715
    %vm1717 = vcmp.lt.s32.totalorder %v1714, %v26
    %v1718 = vsel %vm1717, 1, 0
    %1719 = xla_tuple %v1718
    %v1720 = vand.u32 %v1709, %v1718
    %1721 = xla_tuple %v1720, %v24, %v27
    %1722 = xla_tuple %1721
    %vm1723 = vcmp.ne.s32.totalorder %v1720, 0
    %v1724 = vsel %vm1723, %v24, %v27
    %1725 = xla_tuple %v1724
    %1726 = xla_tuple %v1700, %v1724
    %1727 = xla_tuple %1726
    %v1728 = vmax.f32 %v1700, %v1724
    %1729 = xla_tuple %v1728
    %1730 = xla_tuple %v1728, %v1688
    %1731 = xla_tuple %1730
    %v1732 = vmax.f32 %v1728, %v1688
    %1733 = xla_tuple %v1732
    %s1734 = scalar_lea.vmem [#allocation33], 112
    %1736 = vst [vmem:[%s1734] sm:$0xff] %v1732
    %v1737 = vld [vmem:[%s8] ss:$0 sm:$0xff]
    %s1739 = sor.u32 256, 120
    %1740 = vbcast.lane.b32.xlu0 %v1737, %s1739
    %v1741 = vpop.permute.xlu0 %1740
    %v1742 = vlaneseq
    %v1743 = vshrl.u32 %v1742, 7
    %v1745 = vadd.s32 %v1743, 120
    %1746 = xla_tuple %v1745, %v28
    %1747 = xla_tuple %1746
    %vm1748 = vcmp.lt.s32.totalorder %v1745, %v28
    %v1749 = vsel %vm1748, 1, 0
    %1750 = xla_tuple %v1749
    %1751 = xla_tuple %v1749, %v25, %v27
    %1752 = xla_tuple %1751
    %v1753 = vsel %vm1748, %v25, %v27
    %1754 = xla_tuple %v1753
    %v1755 = vlaneseq
    %v1756 = vshrl.u32 %v1755, 7
    %v1758 = vadd.s32 %v1756, 120
    %1759 = xla_tuple %v1758, %v28
    %1760 = xla_tuple %1759
    %vm1761 = vcmp.ge.s32.totalorder %v1758, %v28
    %v1762 = vsel %vm1761, 1, 0
    %1763 = xla_tuple %v1762
    %v1764 = vlaneseq
    %v1765 = vshrl.u32 %v1764, 7
    %v1767 = vadd.s32 %v1765, 120
    %1768 = xla_tuple %v1767, %v26
    %1769 = xla_tuple %1768
    %vm1770 = vcmp.lt.s32.totalorder %v1767, %v26
    %v1771 = vsel %vm1770, 1, 0
    %1772 = xla_tuple %v1771
    %v1773 = vand.u32 %v1762, %v1771
    %1774 = xla_tuple %v1773, %v24, %v27
    %1775 = xla_tuple %1774
    %vm1776 = vcmp.ne.s32.totalorder %v1773, 0
    %v1777 = vsel %vm1776, %v24, %v27
    %1778 = xla_tuple %v1777
    %1779 = xla_tuple %v1753, %v1777
    %1780 = xla_tuple %1779
    %v1781 = vmax.f32 %v1753, %v1777
    %1782 = xla_tuple %v1781
    %1783 = xla_tuple %v1781, %v1741
    %1784 = xla_tuple %1783
    %v1785 = vmax.f32 %v1781, %v1741
    %1786 = xla_tuple %v1785
    %s1787 = scalar_lea.vmem [#allocation33], 120
    %1789 = vst [vmem:[%s1787] sm:$0xff] %v1785
    %v1790 = vld [vmem:[#allocation31] sm:$0xff]
    %v1791 = vld [vmem:[#allocation31 + $0x8] sm:$0xff]
    %v1792 = vld [vmem:[#allocation31 + $0x10] sm:$0xff]
    %v1793 = vld [vmem:[#allocation31 + $0x18] sm:$0xff]
    %v1794 = vld [vmem:[#allocation31 + $0x20] sm:$0xff]
    %v1795 = vld [vmem:[#allocation31 + $0x28] sm:$0xff]
    %v1796 = vld [vmem:[#allocation31 + $0x30] sm:$0xff]
    %v1797 = vld [vmem:[#allocation31 + $0x38] sm:$0xff]
    %v1798 = vld [vmem:[#allocation31 + $0x40] sm:$0xff]
    %v1799 = vld [vmem:[#allocation31 + $0x48] sm:$0xff]
    %v1800 = vld [vmem:[#allocation31 + $0x50] sm:$0xff]
    %v1801 = vld [vmem:[#allocation31 + $0x58] sm:$0xff]
    %v1802 = vld [vmem:[#allocation31 + $0x60] sm:$0xff]
    %v1803 = vld [vmem:[#allocation31 + $0x68] sm:$0xff]
    %v1804 = vld [vmem:[#allocation31 + $0x70] sm:$0xff]
    %v1805 = vld [vmem:[#allocation31 + $0x78] sm:$0xff]
    %v1806 = vld [vmem:[#allocation31 + $0x80] sm:$0xff]
    %v1807 = vld [vmem:[#allocation31 + $0x88] sm:$0xff]
    %v1808 = vld [vmem:[#allocation31 + $0x90] sm:$0xff]
    %v1809 = vld [vmem:[#allocation31 + $0x98] sm:$0xff]
    %v1810 = vld [vmem:[#allocation31 + $0xa0] sm:$0xff]
    %v1811 = vld [vmem:[#allocation31 + $0xa8] sm:$0xff]
    %v1812 = vld [vmem:[#allocation31 + $0xb0] sm:$0xff]
    %v1813 = vld [vmem:[#allocation31 + $0xb8] sm:$0xff]
    %v1814 = vld [vmem:[#allocation31 + $0xc0] sm:$0xff]
    %v1815 = vld [vmem:[#allocation31 + $0xc8] sm:$0xff]
    %v1816 = vld [vmem:[#allocation31 + $0xd0] sm:$0xff]
    %v1817 = vld [vmem:[#allocation31 + $0xd8] sm:$0xff]
    %v1818 = vld [vmem:[#allocation31 + $0xe0] sm:$0xff]
    %v1819 = vld [vmem:[#allocation31 + $0xe8] sm:$0xff]
    %v1820 = vld [vmem:[#allocation31 + $0xf0] sm:$0xff]
    %v1821 = vld [vmem:[#allocation31 + $0xf8] sm:$0xff]
    %v1822 = vld [vmem:[#allocation31 + $0x100] sm:$0xff]
    %v1823 = vld [vmem:[#allocation31 + $0x108] sm:$0xff]
    %v1824 = vld [vmem:[#allocation31 + $0x110] sm:$0xff]
    %v1825 = vld [vmem:[#allocation31 + $0x118] sm:$0xff]
    %v1826 = vld [vmem:[#allocation31 + $0x120] sm:$0xff]
    %v1827 = vld [vmem:[#allocation31 + $0x128] sm:$0xff]
    %v1828 = vld [vmem:[#allocation31 + $0x130] sm:$0xff]
    %v1829 = vld [vmem:[#allocation31 + $0x138] sm:$0xff]
    %v1830 = vld [vmem:[#allocation31 + $0x140] sm:$0xff]
    %v1831 = vld [vmem:[#allocation31 + $0x148] sm:$0xff]
    %v1832 = vld [vmem:[#allocation31 + $0x150] sm:$0xff]
    %v1833 = vld [vmem:[#allocation31 + $0x158] sm:$0xff]
    %v1834 = vld [vmem:[#allocation31 + $0x160] sm:$0xff]
    %v1835 = vld [vmem:[#allocation31 + $0x168] sm:$0xff]
    %v1836 = vld [vmem:[#allocation31 + $0x170] sm:$0xff]
    %v1837 = vld [vmem:[#allocation31 + $0x178] sm:$0xff]
    %v1838 = vld [vmem:[#allocation31 + $0x180] sm:$0xff]
    %v1839 = vld [vmem:[#allocation31 + $0x188] sm:$0xff]
    %v1840 = vld [vmem:[#allocation31 + $0x190] sm:$0xff]
    %v1841 = vld [vmem:[#allocation31 + $0x198] sm:$0xff]
    %v1842 = vld [vmem:[#allocation31 + $0x1a0] sm:$0xff]
    %v1843 = vld [vmem:[#allocation31 + $0x1a8] sm:$0xff]
    %v1844 = vld [vmem:[#allocation31 + $0x1b0] sm:$0xff]
    %v1845 = vld [vmem:[#allocation31 + $0x1b8] sm:$0xff]
    %v1846 = vld [vmem:[#allocation31 + $0x1c0] sm:$0xff]
    %v1847 = vld [vmem:[#allocation31 + $0x1c8] sm:$0xff]
    %v1848 = vld [vmem:[#allocation31 + $0x1d0] sm:$0xff]
    %v1849 = vld [vmem:[#allocation31 + $0x1d8] sm:$0xff]
    %v1850 = vld [vmem:[#allocation31 + $0x1e0] sm:$0xff]
    %v1851 = vld [vmem:[#allocation31 + $0x1e8] sm:$0xff]
    %v1852 = vld [vmem:[#allocation31 + $0x1f0] sm:$0xff]
    %v1853 = vld [vmem:[#allocation31 + $0x1f8] sm:$0xff]
    %v1854 = vld [vmem:[#allocation32] sm:$0xff]
    %v1855 = vld [vmem:[#allocation32 + $0x8] sm:$0xff]
    %v1856 = vld [vmem:[#allocation32 + $0x10] sm:$0xff]
    %v1857 = vld [vmem:[#allocation32 + $0x18] sm:$0xff]
    %v1858 = vld [vmem:[#allocation32 + $0x20] sm:$0x1f]
    %vm1859 = vcmask 302080
    %v1861 = vsel %vm1859, %v1790, 0
    %v1864 = vsel %vm1859, %v1791, 0
    %v1867 = vsel %vm1859, %v1792, 0
    %v1870 = vsel %vm1859, %v1793, 0
    %v1873 = vsel %vm1859, %v1794, 0
    %v1876 = vsel %vm1859, %v1795, 0
    %v1879 = vsel %vm1859, %v1796, 0
    %v1882 = vsel %vm1859, %v1797, 0
    %v1885 = vsel %vm1859, %v1798, 0
    %v1888 = vsel %vm1859, %v1799, 0
    %v1891 = vsel %vm1859, %v1800, 0
    %v1894 = vsel %vm1859, %v1801, 0
    %v1897 = vsel %vm1859, %v1802, 0
    %v1900 = vsel %vm1859, %v1803, 0
    %v1903 = vsel %vm1859, %v1804, 0
    %v1906 = vsel %vm1859, %v1805, 0
    %v1909 = vsel %vm1859, %v1806, 0
    %v1912 = vsel %vm1859, %v1807, 0
    %v1915 = vsel %vm1859, %v1808, 0
    %v1918 = vsel %vm1859, %v1809, 0
    %v1921 = vsel %vm1859, %v1810, 0
    %v1924 = vsel %vm1859, %v1811, 0
    %v1927 = vsel %vm1859, %v1812, 0
    %v1930 = vsel %vm1859, %v1813, 0
    %v1933 = vsel %vm1859, %v1814, 0
    %v1936 = vsel %vm1859, %v1815, 0
    %v1939 = vsel %vm1859, %v1816, 0
    %v1942 = vsel %vm1859, %v1817, 0
    %v1945 = vsel %vm1859, %v1818, 0
    %v1948 = vsel %vm1859, %v1819, 0
    %v1951 = vsel %vm1859, %v1820, 0
    %v1954 = vsel %vm1859, %v1821, 0
    %v1957 = vsel %vm1859, %v1822, 0
    %v1960 = vsel %vm1859, %v1823, 0
    %v1963 = vsel %vm1859, %v1824, 0
    %v1966 = vsel %vm1859, %v1825, 0
    %v1969 = vsel %vm1859, %v1826, 0
    %v1972 = vsel %vm1859, %v1827, 0
    %v1975 = vsel %vm1859, %v1828, 0
    %v1978 = vsel %vm1859, %v1829, 0
    %v1981 = vsel %vm1859, %v1830, 0
    %v1984 = vsel %vm1859, %v1831, 0
    %v1987 = vsel %vm1859, %v1832, 0
    %v1990 = vsel %vm1859, %v1833, 0
    %v1993 = vsel %vm1859, %v1834, 0
    %v1996 = vsel %vm1859, %v1835, 0
    %v1999 = vsel %vm1859, %v1836, 0
    %v2002 = vsel %vm1859, %v1837, 0
    %v2005 = vsel %vm1859, %v1838, 0
    %v2008 = vsel %vm1859, %v1839, 0
    %v2011 = vsel %vm1859, %v1840, 0
    %v2014 = vsel %vm1859, %v1841, 0
    %v2017 = vsel %vm1859, %v1842, 0
    %v2020 = vsel %vm1859, %v1843, 0
    %v2023 = vsel %vm1859, %v1844, 0
    %v2026 = vsel %vm1859, %v1845, 0
    %v2029 = vsel %vm1859, %v1846, 0
    %v2032 = vsel %vm1859, %v1847, 0
    %v2035 = vsel %vm1859, %v1848, 0
    %v2038 = vsel %vm1859, %v1849, 0
    %v2041 = vsel %vm1859, %v1850, 0
    %v2044 = vsel %vm1859, %v1851, 0
    %v2047 = vsel %vm1859, %v1852, 0
    %v2050 = vsel %vm1859, %v1853, 0
    %vm2052 = vcmask 1044480
    %v2054 = vsel %vm2052, %v1858, 0
    %2056 = vmatprep.subr.mxu0 0.0
    %2057 = vmatpush1.msra.mxu0 %v1854
    %2058 = vmatprep.subr.mxu0 0.0
    %2059 = vmatpush1.msra.mxu0 %v1855
    %2060 = vmatprep.subr.mxu0 0.0
    %2061 = vmatpush1.msra.mxu0 %v1856
    %2062 = vmatprep.subr.mxu0 0.0
    %2063 = vmatpush1.msra.mxu0 %v1857
    %2064 = vmatprep.subr.mxu0 0.0
    %2065 = vmatpush1.msra.mxu0 %v2054
    %2066 = vmatprep.subr.mxu0 0.0
    %2067 = vmatpush1.msra.mxu0 0.0
    %2068 = vmatprep.subr.mxu0 0.0
    %2069 = vmatpush1.msra.mxu0 0.0
    %2070 = vmatprep.subr.mxu0 0.0
    %2071 = vmatpush1.msra.mxu0 0.0
    %2072 = vmatprep.subr.mxu0 0.0
    %2073 = vmatpush1.msra.mxu0 0.0
    %2074 = vmatprep.subr.mxu0 0.0
    %2075 = vmatpush1.msra.mxu0 0.0
    %2076 = vmatprep.subr.mxu0 0.0
    %2077 = vmatpush1.msra.mxu0 0.0
    %2078 = vmatprep.subr.mxu0 0.0
    %2079 = vmatpush1.msra.mxu0 0.0
    %2080 = vmatprep.subr.mxu0 0.0
    %2081 = vmatpush1.msra.mxu0 0.0
    %2082 = vmatprep.subr.mxu0 0.0
    %2083 = vmatpush1.msra.mxu0 0.0
    %2084 = vmatprep.subr.mxu0 0.0
    %2085 = vmatpush1.msra.mxu0 0.0
    %2086 = vmatprep.subr.mxu0 0.0
    %2087 = vmatpush1.msra.mxu0 0.0
    %2088 = vmatprep.subr.mxu0 0.0
    %2089 = vmatpush1.msra.mxu0 0.0
    %2090 = vmatprep.subr.mxu0 0.0
    %2091 = vmatpush1.msra.mxu0 0.0
    %2092 = vmatprep.subr.mxu0 0.0
    %2093 = vmatpush1.msra.mxu0 0.0
    %2094 = vmatprep.subr.mxu0 0.0
    %2095 = vmatpush1.msra.mxu0 0.0
    %2096 = vmatprep.subr.mxu0 0.0
    %2097 = vmatpush1.msra.mxu0 0.0
    %2098 = vmatprep.subr.mxu0 0.0
    %2099 = vmatpush1.msra.mxu0 0.0
    %2100 = vmatprep.subr.mxu0 0.0
    %2101 = vmatpush1.msra.mxu0 0.0
    %2102 = vmatprep.subr.mxu0 0.0
    %2103 = vmatpush1.msra.mxu0 0.0
    %2104 = vmatprep.subr.mxu0 0.0
    %2105 = vmatpush1.msra.mxu0 0.0
    %2106 = vmatprep.subr.mxu0 0.0
    %2107 = vmatpush1.msra.mxu0 0.0
    %2108 = vmatprep.subr.mxu0 0.0
    %2109 = vmatpush1.msra.mxu0 0.0
    %2110 = vmatprep.subr.mxu0 0.0
    %2111 = vmatpush1.msra.mxu0 0.0
    %2112 = vmatprep.subr.mxu0 0.0
    %2113 = vmatpush1.msra.mxu0 0.0
    %2114 = vmatprep.subr.mxu0 0.0
    %2115 = vmatpush1.msra.mxu0 0.0
    %2116 = vmatprep.subr.mxu0 0.0
    %2117 = vmatpush1.msra.mxu0 0.0
    %2118 = vmatprep.subr.mxu0 0.0
    %2119 = vmatpush1.msra.mxu0 0.0
    %2120 = vmatprep.mubr.f32.mxu0 0.0
    %2121 = vmatmul.mubr.f32.gmra.mrb[0].mxu0 %v1861
    %v2122 = vpop.f32.mrb[0].mxu0
    %v2123 = vadd.f32 0.0, %v2122
    %v2124 = vpop.f32.mrb[0].mxu0
    %2125 = vmatprep.mubr.f32.mxu0 0.0
    %2126 = vmatmul.mubr.f32.gmra.mrb[0].mxu0 %v1864
    %v2127 = vpop.f32.mrb[0].mxu0
    %v2128 = vadd.f32 0.0, %v2127
    %v2129 = vpop.f32.mrb[0].mxu0
    %2130 = vmatprep.mubr.f32.mxu0 0.0
    %2131 = vmatmul.mubr.f32.gmra.mrb[0].mxu0 %v1867
    %v2132 = vpop.f32.mrb[0].mxu0
    %v2133 = vadd.f32 0.0, %v2132
    %v2134 = vpop.f32.mrb[0].mxu0
    %2135 = vmatprep.mubr.f32.mxu0 0.0
    %2136 = vmatmul.mubr.f32.gmra.mrb[0].mxu0 %v1870
    %v2137 = vpop.f32.mrb[0].mxu0
    %v2138 = vadd.f32 0.0, %v2137
    %v2139 = vpop.f32.mrb[0].mxu0
    %2140 = vmatprep.mubr.f32.mxu0 0.0
    %2141 = vmatmul.mubr.f32.gmra.mrb[0].mxu0 %v1873
    %v2142 = vpop.f32.mrb[0].mxu0
    %v2143 = vadd.f32 0.0, %v2142
    %v2144 = vpop.f32.mrb[0].mxu0
    %2145 = vmatprep.mubr.f32.mxu0 0.0
    %2146 = vmatmul.mubr.f32.gmra.mrb[0].mxu0 %v1876
    %v2147 = vpop.f32.mrb[0].mxu0
    %v2148 = vadd.f32 0.0, %v2147
    %v2149 = vpop.f32.mrb[0].mxu0
    %2150 = vmatprep.mubr.f32.mxu0 0.0
    %2151 = vmatmul.mubr.f32.gmra.mrb[0].mxu0 %v1879
    %v2152 = vpop.f32.mrb[0].mxu0
    %v2153 = vadd.f32 0.0, %v2152
    %v2154 = vpop.f32.mrb[0].mxu0
    %2155 = vmatprep.mubr.f32.mxu0 0.0
    %2156 = vmatmul.mubr.f32.gmra.mrb[0].mxu0 %v1882
    %v2157 = vpop.f32.mrb[0].mxu0
    %v2158 = vadd.f32 0.0, %v2157
    %v2159 = vpop.f32.mrb[0].mxu0
    %2160 = vmatprep.mubr.f32.mxu0 0.0
    %2161 = vmatmul.mubr.f32.gmra.mrb[0].mxu0 %v1885
    %v2162 = vpop.f32.mrb[0].mxu0
    %v2163 = vadd.f32 0.0, %v2162
    %v2164 = vpop.f32.mrb[0].mxu0
    %2165 = vmatprep.mubr.f32.mxu0 0.0
    %2166 = vmatmul.mubr.f32.gmra.mrb[0].mxu0 %v1888
    %v2167 = vpop.f32.mrb[0].mxu0
    %v2168 = vadd.f32 0.0, %v2167
    %v2169 = vpop.f32.mrb[0].mxu0
    %2170 = vmatprep.mubr.f32.mxu0 0.0
    %2171 = vmatmul.mubr.f32.gmra.mrb[0].mxu0 %v1891
    %v2172 = vpop.f32.mrb[0].mxu0
    %v2173 = vadd.f32 0.0, %v2172
    %v2174 = vpop.f32.mrb[0].mxu0
    %2175 = vmatprep.mubr.f32.mxu0 0.0
    %2176 = vmatmul.mubr.f32.gmra.mrb[0].mxu0 %v1894
    %v2177 = vpop.f32.mrb[0].mxu0
    %v2178 = vadd.f32 0.0, %v2177
    %v2179 = vpop.f32.mrb[0].mxu0
    %2180 = vmatprep.mubr.f32.mxu0 0.0
    %2181 = vmatmul.mubr.f32.gmra.mrb[0].mxu0 %v1897
    %v2182 = vpop.f32.mrb[0].mxu0
    %v2183 = vadd.f32 0.0, %v2182
    %v2184 = vpop.f32.mrb[0].mxu0
    %2185 = vmatprep.mubr.f32.mxu0 0.0
    %2186 = vmatmul.mubr.f32.gmra.mrb[0].mxu0 %v1900
    %v2187 = vpop.f32.mrb[0].mxu0
    %v2188 = vadd.f32 0.0, %v2187
    %v2189 = vpop.f32.mrb[0].mxu0
    %2190 = vmatprep.mubr.f32.mxu0 0.0
    %2191 = vmatmul.mubr.f32.gmra.mrb[0].mxu0 %v1903
    %v2192 = vpop.f32.mrb[0].mxu0
    %v2193 = vadd.f32 0.0, %v2192
    %v2194 = vpop.f32.mrb[0].mxu0
    %2195 = vmatprep.mubr.f32.mxu0 0.0
    %2196 = vmatmul.mubr.f32.gmra.mrb[0].mxu0 %v1906
    %v2197 = vpop.f32.mrb[0].mxu0
    %v2198 = vadd.f32 0.0, %v2197
    %v2199 = vpop.f32.mrb[0].mxu0
    %2200 = vmatprep.mubr.f32.mxu0 0.0
    %2201 = vmatmul.mubr.f32.gmra.mrb[0].mxu0 %v1909
    %v2202 = vpop.f32.mrb[0].mxu0
    %v2203 = vadd.f32 0.0, %v2202
    %v2204 = vpop.f32.mrb[0].mxu0
    %2205 = vmatprep.mubr.f32.mxu0 0.0
    %2206 = vmatmul.mubr.f32.gmra.mrb[0].mxu0 %v1912
    %v2207 = vpop.f32.mrb[0].mxu0
    %v2208 = vadd.f32 0.0, %v2207
    %v2209 = vpop.f32.mrb[0].mxu0
    %2210 = vmatprep.mubr.f32.mxu0 0.0
    %2211 = vmatmul.mubr.f32.gmra.mrb[0].mxu0 %v1915
    %v2212 = vpop.f32.mrb[0].mxu0
    %v2213 = vadd.f32 0.0, %v2212
    %v2214 = vpop.f32.mrb[0].mxu0
    %2215 = vmatprep.mubr.f32.mxu0 0.0
    %2216 = vmatmul.mubr.f32.gmra.mrb[0].mxu0 %v1918
    %v2217 = vpop.f32.mrb[0].mxu0
    %v2218 = vadd.f32 0.0, %v2217
    %v2219 = vpop.f32.mrb[0].mxu0
    %2220 = vmatprep.mubr.f32.mxu0 0.0
    %2221 = vmatmul.mubr.f32.gmra.mrb[0].mxu0 %v1921
    %v2222 = vpop.f32.mrb[0].mxu0
    %v2223 = vadd.f32 0.0, %v2222
    %v2224 = vpop.f32.mrb[0].mxu0
    %2225 = vmatprep.mubr.f32.mxu0 0.0
    %2226 = vmatmul.mubr.f32.gmra.mrb[0].mxu0 %v1924
    %v2227 = vpop.f32.mrb[0].mxu0
    %v2228 = vadd.f32 0.0, %v2227
    %v2229 = vpop.f32.mrb[0].mxu0
    %2230 = vmatprep.mubr.f32.mxu0 0.0
    %2231 = vmatmul.mubr.f32.gmra.mrb[0].mxu0 %v1927
    %v2232 = vpop.f32.mrb[0].mxu0
    %v2233 = vadd.f32 0.0, %v2232
    %v2234 = vpop.f32.mrb[0].mxu0
    %2235 = vmatprep.mubr.f32.mxu0 0.0
    %2236 = vmatmul.mubr.f32.gmra.mrb[0].mxu0 %v1930
    %v2237 = vpop.f32.mrb[0].mxu0
    %v2238 = vadd.f32 0.0, %v2237
    %v2239 = vpop.f32.mrb[0].mxu0
    %2240 = vmatprep.mubr.f32.mxu0 0.0
    %2241 = vmatmul.mubr.f32.gmra.mrb[0].mxu0 %v1933
    %v2242 = vpop.f32.mrb[0].mxu0
    %v2243 = vadd.f32 0.0, %v2242
    %v2244 = vpop.f32.mrb[0].mxu0
    %2245 = vmatprep.mubr.f32.mxu0 0.0
    %2246 = vmatmul.mubr.f32.gmra.mrb[0].mxu0 %v1936
    %v2247 = vpop.f32.mrb[0].mxu0
    %v2248 = vadd.f32 0.0, %v2247
    %v2249 = vpop.f32.mrb[0].mxu0
    %2250 = vmatprep.mubr.f32.mxu0 0.0
    %2251 = vmatmul.mubr.f32.gmra.mrb[0].mxu0 %v1939
    %v2252 = vpop.f32.mrb[0].mxu0
    %v2253 = vadd.f32 0.0, %v2252
    %v2254 = vpop.f32.mrb[0].mxu0
    %2255 = vmatprep.mubr.f32.mxu0 0.0
    %2256 = vmatmul.mubr.f32.gmra.mrb[0].mxu0 %v1942
    %v2257 = vpop.f32.mrb[0].mxu0
    %v2258 = vadd.f32 0.0, %v2257
    %v2259 = vpop.f32.mrb[0].mxu0
    %2260 = vmatprep.mubr.f32.mxu0 0.0
    %2261 = vmatmul.mubr.f32.gmra.mrb[0].mxu0 %v1945
    %v2262 = vpop.f32.mrb[0].mxu0
    %v2263 = vadd.f32 0.0, %v2262
    %v2264 = vpop.f32.mrb[0].mxu0
    %2265 = vmatprep.mubr.f32.mxu0 0.0
    %2266 = vmatmul.mubr.f32.gmra.mrb[0].mxu0 %v1948
    %v2267 = vpop.f32.mrb[0].mxu0
    %v2268 = vadd.f32 0.0, %v2267
    %v2269 = vpop.f32.mrb[0].mxu0
    %2270 = vmatprep.mubr.f32.mxu0 0.0
    %2271 = vmatmul.mubr.f32.gmra.mrb[0].mxu0 %v1951
    %v2272 = vpop.f32.mrb[0].mxu0
    %v2273 = vadd.f32 0.0, %v2272
    %v2274 = vpop.f32.mrb[0].mxu0
    %2275 = vmatprep.mubr.f32.mxu0 0.0
    %2276 = vmatmul.mubr.f32.gmra.mrb[0].mxu0 %v1954
    %v2277 = vpop.f32.mrb[0].mxu0
    %v2278 = vadd.f32 0.0, %v2277
    %v2279 = vpop.f32.mrb[0].mxu0
    %2280 = vmatprep.mubr.f32.mxu0 0.0
    %2281 = vmatmul.mubr.f32.gmra.mrb[0].mxu0 %v1957
    %v2282 = vpop.f32.mrb[0].mxu0
    %v2283 = vadd.f32 0.0, %v2282
    %v2284 = vpop.f32.mrb[0].mxu0
    %2285 = vmatprep.mubr.f32.mxu0 0.0
    %2286 = vmatmul.mubr.f32.gmra.mrb[0].mxu0 %v1960
    %v2287 = vpop.f32.mrb[0].mxu0
    %v2288 = vadd.f32 0.0, %v2287
    %v2289 = vpop.f32.mrb[0].mxu0
    %2290 = vmatprep.mubr.f32.mxu0 0.0
    %2291 = vmatmul.mubr.f32.gmra.mrb[0].mxu0 %v1963
    %v2292 = vpop.f32.mrb[0].mxu0
    %v2293 = vadd.f32 0.0, %v2292
    %v2294 = vpop.f32.mrb[0].mxu0
    %2295 = vmatprep.mubr.f32.mxu0 0.0
    %2296 = vmatmul.mubr.f32.gmra.mrb[0].mxu0 %v1966
    %v2297 = vpop.f32.mrb[0].mxu0
    %v2298 = vadd.f32 0.0, %v2297
    %v2299 = vpop.f32.mrb[0].mxu0
    %2300 = vmatprep.mubr.f32.mxu0 0.0
    %2301 = vmatmul.mubr.f32.gmra.mrb[0].mxu0 %v1969
    %v2302 = vpop.f32.mrb[0].mxu0
    %v2303 = vadd.f32 0.0, %v2302
    %v2304 = vpop.f32.mrb[0].mxu0
    %2305 = vmatprep.mubr.f32.mxu0 0.0
    %2306 = vmatmul.mubr.f32.gmra.mrb[0].mxu0 %v1972
    %v2307 = vpop.f32.mrb[0].mxu0
    %v2308 = vadd.f32 0.0, %v2307
    %v2309 = vpop.f32.mrb[0].mxu0
    %2310 = vmatprep.mubr.f32.mxu0 0.0
    %2311 = vmatmul.mubr.f32.gmra.mrb[0].mxu0 %v1975
    %v2312 = vpop.f32.mrb[0].mxu0
    %v2313 = vadd.f32 0.0, %v2312
    %v2314 = vpop.f32.mrb[0].mxu0
    %2315 = vmatprep.mubr.f32.mxu0 0.0
    %2316 = vmatmul.mubr.f32.gmra.mrb[0].mxu0 %v1978
    %v2317 = vpop.f32.mrb[0].mxu0
    %v2318 = vadd.f32 0.0, %v2317
    %v2319 = vpop.f32.mrb[0].mxu0
    %2320 = vmatprep.mubr.f32.mxu0 0.0
    %2321 = vmatmul.mubr.f32.gmra.mrb[0].mxu0 %v1981
    %v2322 = vpop.f32.mrb[0].mxu0
    %v2323 = vadd.f32 0.0, %v2322
    %v2324 = vpop.f32.mrb[0].mxu0
    %2325 = vmatprep.mubr.f32.mxu0 0.0
    %2326 = vmatmul.mubr.f32.gmra.mrb[0].mxu0 %v1984
    %v2327 = vpop.f32.mrb[0].mxu0
    %v2328 = vadd.f32 0.0, %v2327
    %v2329 = vpop.f32.mrb[0].mxu0
    %2330 = vmatprep.mubr.f32.mxu0 0.0
    %2331 = vmatmul.mubr.f32.gmra.mrb[0].mxu0 %v1987
    %v2332 = vpop.f32.mrb[0].mxu0
    %v2333 = vadd.f32 0.0, %v2332
    %v2334 = vpop.f32.mrb[0].mxu0
    %2335 = vmatprep.mubr.f32.mxu0 0.0
    %2336 = vmatmul.mubr.f32.gmra.mrb[0].mxu0 %v1990
    %v2337 = vpop.f32.mrb[0].mxu0
    %v2338 = vadd.f32 0.0, %v2337
    %v2339 = vpop.f32.mrb[0].mxu0
    %2340 = vmatprep.mubr.f32.mxu0 0.0
    %2341 = vmatmul.mubr.f32.gmra.mrb[0].mxu0 %v1993
    %v2342 = vpop.f32.mrb[0].mxu0
    %v2343 = vadd.f32 0.0, %v2342
    %v2344 = vpop.f32.mrb[0].mxu0
    %2345 = vmatprep.mubr.f32.mxu0 0.0
    %2346 = vmatmul.mubr.f32.gmra.mrb[0].mxu0 %v1996
    %v2347 = vpop.f32.mrb[0].mxu0
    %v2348 = vadd.f32 0.0, %v2347
    %v2349 = vpop.f32.mrb[0].mxu0
    %2350 = vmatprep.mubr.f32.mxu0 0.0
    %2351 = vmatmul.mubr.f32.gmra.mrb[0].mxu0 %v1999
    %v2352 = vpop.f32.mrb[0].mxu0
    %v2353 = vadd.f32 0.0, %v2352
    %v2354 = vpop.f32.mrb[0].mxu0
    %2355 = vmatprep.mubr.f32.mxu0 0.0
    %2356 = vmatmul.mubr.f32.gmra.mrb[0].mxu0 %v2002
    %v2357 = vpop.f32.mrb[0].mxu0
    %v2358 = vadd.f32 0.0, %v2357
    %v2359 = vpop.f32.mrb[0].mxu0
    %2360 = vmatprep.mubr.f32.mxu0 0.0
    %2361 = vmatmul.mubr.f32.gmra.mrb[0].mxu0 %v2005
    %v2362 = vpop.f32.mrb[0].mxu0
    %v2363 = vadd.f32 0.0, %v2362
    %v2364 = vpop.f32.mrb[0].mxu0
    %2365 = vmatprep.mubr.f32.mxu0 0.0
    %2366 = vmatmul.mubr.f32.gmra.mrb[0].mxu0 %v2008
    %v2367 = vpop.f32.mrb[0].mxu0
    %v2368 = vadd.f32 0.0, %v2367
    %v2369 = vpop.f32.mrb[0].mxu0
    %2370 = vmatprep.mubr.f32.mxu0 0.0
    %2371 = vmatmul.mubr.f32.gmra.mrb[0].mxu0 %v2011
    %v2372 = vpop.f32.mrb[0].mxu0
    %v2373 = vadd.f32 0.0, %v2372
    %v2374 = vpop.f32.mrb[0].mxu0
    %2375 = vmatprep.mubr.f32.mxu0 0.0
    %2376 = vmatmul.mubr.f32.gmra.mrb[0].mxu0 %v2014
    %v2377 = vpop.f32.mrb[0].mxu0
    %v2378 = vadd.f32 0.0, %v2377
    %v2379 = vpop.f32.mrb[0].mxu0
    %2380 = vmatprep.mubr.f32.mxu0 0.0
    %2381 = vmatmul.mubr.f32.gmra.mrb[0].mxu0 %v2017
    %v2382 = vpop.f32.mrb[0].mxu0
    %v2383 = vadd.f32 0.0, %v2382
    %v2384 = vpop.f32.mrb[0].mxu0
    %2385 = vmatprep.mubr.f32.mxu0 0.0
    %2386 = vmatmul.mubr.f32.gmra.mrb[0].mxu0 %v2020
    %v2387 = vpop.f32.mrb[0].mxu0
    %v2388 = vadd.f32 0.0, %v2387
    %v2389 = vpop.f32.mrb[0].mxu0
    %2390 = vmatprep.mubr.f32.mxu0 0.0
    %2391 = vmatmul.mubr.f32.gmra.mrb[0].mxu0 %v2023
    %v2392 = vpop.f32.mrb[0].mxu0
    %v2393 = vadd.f32 0.0, %v2392
    %v2394 = vpop.f32.mrb[0].mxu0
    %2395 = vmatprep.mubr.f32.mxu0 0.0
    %2396 = vmatmul.mubr.f32.gmra.mrb[0].mxu0 %v2026
    %v2397 = vpop.f32.mrb[0].mxu0
    %v2398 = vadd.f32 0.0, %v2397
    %v2399 = vpop.f32.mrb[0].mxu0
    %2400 = vmatprep.mubr.f32.mxu0 0.0
    %2401 = vmatmul.mubr.f32.gmra.mrb[0].mxu0 %v2029
    %v2402 = vpop.f32.mrb[0].mxu0
    %v2403 = vadd.f32 0.0, %v2402
    %v2404 = vpop.f32.mrb[0].mxu0
    %2405 = vmatprep.mubr.f32.mxu0 0.0
    %2406 = vmatmul.mubr.f32.gmra.mrb[0].mxu0 %v2032
    %v2407 = vpop.f32.mrb[0].mxu0
    %v2408 = vadd.f32 0.0, %v2407
    %v2409 = vpop.f32.mrb[0].mxu0
    %2410 = vmatprep.mubr.f32.mxu0 0.0
    %2411 = vmatmul.mubr.f32.gmra.mrb[0].mxu0 %v2035
    %v2412 = vpop.f32.mrb[0].mxu0
    %v2413 = vadd.f32 0.0, %v2412
    %v2414 = vpop.f32.mrb[0].mxu0
    %2415 = vmatprep.mubr.f32.mxu0 0.0
    %2416 = vmatmul.mubr.f32.gmra.mrb[0].mxu0 %v2038
    %v2417 = vpop.f32.mrb[0].mxu0
    %v2418 = vadd.f32 0.0, %v2417
    %v2419 = vpop.f32.mrb[0].mxu0
    %2420 = vmatprep.mubr.f32.mxu0 0.0
    %2421 = vmatmul.mubr.f32.gmra.mrb[0].mxu0 %v2041
    %v2422 = vpop.f32.mrb[0].mxu0
    %v2423 = vadd.f32 0.0, %v2422
    %v2424 = vpop.f32.mrb[0].mxu0
    %2425 = vmatprep.mubr.f32.mxu0 0.0
    %2426 = vmatmul.mubr.f32.gmra.mrb[0].mxu0 %v2044
    %v2427 = vpop.f32.mrb[0].mxu0
    %v2428 = vadd.f32 0.0, %v2427
    %v2429 = vpop.f32.mrb[0].mxu0
    %2430 = vmatprep.mubr.f32.mxu0 0.0
    %2431 = vmatmul.mubr.f32.gmra.mrb[0].mxu0 %v2047
    %v2432 = vpop.f32.mrb[0].mxu0
    %v2433 = vadd.f32 0.0, %v2432
    %v2434 = vpop.f32.mrb[0].mxu0
    %2435 = vmatprep.mubr.f32.mxu0 0.0
    %2436 = vmatmul.mubr.f32.gmra.mrb[0].mxu0 %v2050
    %v2437 = vpop.f32.mrb[0].mxu0
    %v2438 = vadd.f32 0.0, %v2437
    %v2439 = vpop.f32.mrb[0].mxu0
    %2440 = vdwg.mxu0
    %v2441 = vmax.f32 %v2123, 0.0
    %v2442 = vmax.f32 %v2128, 0.0
    %v2443 = vmax.f32 %v2133, 0.0
    %v2444 = vmax.f32 %v2138, 0.0
    %v2445 = vmax.f32 %v2143, 0.0
    %v2446 = vmax.f32 %v2148, 0.0
    %v2447 = vmax.f32 %v2153, 0.0
    %v2448 = vmax.f32 %v2158, 0.0
    %v2449 = vmax.f32 %v2163, 0.0
    %v2450 = vmax.f32 %v2168, 0.0
    %v2451 = vmax.f32 %v2173, 0.0
    %v2452 = vmax.f32 %v2178, 0.0
    %v2453 = vmax.f32 %v2183, 0.0
    %v2454 = vmax.f32 %v2188, 0.0
    %v2455 = vmax.f32 %v2193, 0.0
    %v2456 = vmax.f32 %v2198, 0.0
    %v2457 = vmax.f32 %v2203, 0.0
    %v2458 = vmax.f32 %v2208, 0.0
    %v2459 = vmax.f32 %v2213, 0.0
    %v2460 = vmax.f32 %v2218, 0.0
    %v2461 = vmax.f32 %v2223, 0.0
    %v2462 = vmax.f32 %v2228, 0.0
    %v2463 = vmax.f32 %v2233, 0.0
    %v2464 = vmax.f32 %v2238, 0.0
    %v2465 = vmax.f32 %v2243, 0.0
    %v2466 = vmax.f32 %v2248, 0.0
    %v2467 = vmax.f32 %v2253, 0.0
    %v2468 = vmax.f32 %v2258, 0.0
    %v2469 = vmax.f32 %v2263, 0.0
    %v2470 = vmax.f32 %v2268, 0.0
    %v2471 = vmax.f32 %v2273, 0.0
    %v2472 = vmax.f32 %v2278, 0.0
    %v2473 = vmax.f32 %v2283, 0.0
    %v2474 = vmax.f32 %v2288, 0.0
    %v2475 = vmax.f32 %v2293, 0.0
    %v2476 = vmax.f32 %v2298, 0.0
    %v2477 = vmax.f32 %v2303, 0.0
    %v2478 = vmax.f32 %v2308, 0.0
    %v2479 = vmax.f32 %v2313, 0.0
    %v2480 = vmax.f32 %v2318, 0.0
    %v2481 = vmax.f32 %v2323, 0.0
    %v2482 = vmax.f32 %v2328, 0.0
    %v2483 = vmax.f32 %v2333, 0.0
    %v2484 = vmax.f32 %v2338, 0.0
    %v2485 = vmax.f32 %v2343, 0.0
    %v2486 = vmax.f32 %v2348, 0.0
    %v2487 = vmax.f32 %v2353, 0.0
    %v2488 = vmax.f32 %v2358, 0.0
    %v2489 = vmax.f32 %v2363, 0.0
    %v2490 = vmax.f32 %v2368, 0.0
    %v2491 = vmax.f32 %v2373, 0.0
    %v2492 = vmax.f32 %v2378, 0.0
    %v2493 = vmax.f32 %v2383, 0.0
    %v2494 = vmax.f32 %v2388, 0.0
    %v2495 = vmax.f32 %v2393, 0.0
    %v2496 = vmax.f32 %v2398, 0.0
    %v2497 = vmax.f32 %v2403, 0.0
    %v2498 = vmax.f32 %v2408, 0.0
    %v2499 = vmax.f32 %v2413, 0.0
    %v2500 = vmax.f32 %v2418, 0.0
    %v2501 = vmax.f32 %v2423, 0.0
    %v2502 = vmax.f32 %v2428, 0.0
    %v2503 = vmax.f32 %v2433, 0.0
    %v2504 = vmax.f32 %v2438, 0.0
    %v2505 = vadd.f32 %v2441, %v2442
    %v2506 = vadd.f32 %v2505, %v2443
    %v2507 = vadd.f32 %v2506, %v2444
    %v2508 = vadd.f32 %v2507, %v2445
    %v2509 = vadd.f32 %v2508, %v2446
    %v2510 = vadd.f32 %v2509, %v2447
    %v2511 = vadd.f32 %v2510, %v2448
    %v2512 = vadd.f32 %v2511, %v2449
    %v2513 = vadd.f32 %v2512, %v2450
    %v2514 = vadd.f32 %v2513, %v2451
    %v2515 = vadd.f32 %v2514, %v2452
    %v2516 = vadd.f32 %v2515, %v2453
    %v2517 = vadd.f32 %v2516, %v2454
    %v2518 = vadd.f32 %v2517, %v2455
    %v2519 = vadd.f32 %v2518, %v2456
    %v2520 = vadd.f32 %v2519, %v2457
    %v2521 = vadd.f32 %v2520, %v2458
    %v2522 = vadd.f32 %v2521, %v2459
    %v2523 = vadd.f32 %v2522, %v2460
    %v2524 = vadd.f32 %v2523, %v2461
    %v2525 = vadd.f32 %v2524, %v2462
    %v2526 = vadd.f32 %v2525, %v2463
    %v2527 = vadd.f32 %v2526, %v2464
    %v2528 = vadd.f32 %v2527, %v2465
    %v2529 = vadd.f32 %v2528, %v2466
    %v2530 = vadd.f32 %v2529, %v2467
    %v2531 = vadd.f32 %v2530, %v2468
    %v2532 = vadd.f32 %v2531, %v2469
    %v2533 = vadd.f32 %v2532, %v2470
    %v2534 = vadd.f32 %v2533, %v2471
    %v2535 = vadd.f32 %v2534, %v2472
    %v2536 = vrot.slane %v2535, 4
    %v2537 = vadd.f32 %v2535, %v2536
    %v2538 = vrot.slane %v2537, 2
    %v2539 = vadd.f32 %v2537, %v2538
    %v2540 = vrot.slane %v2539, 1
    %v2541 = vadd.f32 %v2539, %v2540
    %v2542 = vadd.f32 %v2473, %v2474
    %v2543 = vadd.f32 %v2542, %v2475
    %v2544 = vadd.f32 %v2543, %v2476
    %v2545 = vadd.f32 %v2544, %v2477
    %v2546 = vadd.f32 %v2545, %v2478
    %v2547 = vadd.f32 %v2546, %v2479
    %v2548 = vadd.f32 %v2547, %v2480
    %v2549 = vadd.f32 %v2548, %v2481
    %v2550 = vadd.f32 %v2549, %v2482
    %v2551 = vadd.f32 %v2550, %v2483
    %v2552 = vadd.f32 %v2551, %v2484
    %v2553 = vadd.f32 %v2552, %v2485
    %v2554 = vadd.f32 %v2553, %v2486
    %v2555 = vadd.f32 %v2554, %v2487
    %v2556 = vadd.f32 %v2555, %v2488
    %v2557 = vadd.f32 %v2556, %v2489
    %v2558 = vadd.f32 %v2557, %v2490
    %v2559 = vadd.f32 %v2558, %v2491
    %v2560 = vadd.f32 %v2559, %v2492
    %v2561 = vadd.f32 %v2560, %v2493
    %v2562 = vadd.f32 %v2561, %v2494
    %v2563 = vadd.f32 %v2562, %v2495
    %v2564 = vadd.f32 %v2563, %v2496
    %v2565 = vadd.f32 %v2564, %v2497
    %v2566 = vadd.f32 %v2565, %v2498
    %v2567 = vadd.f32 %v2566, %v2499
    %v2568 = vadd.f32 %v2567, %v2500
    %v2569 = vadd.f32 %v2568, %v2501
    %v2570 = vadd.f32 %v2569, %v2502
    %v2571 = vadd.f32 %v2570, %v2503
    %v2572 = vadd.f32 %v2571, %v2504
    %v2573 = vrot.slane %v2572, 4
    %v2574 = vadd.f32 %v2572, %v2573
    %v2575 = vrot.slane %v2574, 2
    %v2576 = vadd.f32 %v2574, %v2575
    %v2577 = vrot.slane %v2576, 1
    %v2578 = vadd.f32 %v2576, %v2577
    %v2579 = vmul.f32 %v2541, 0.00390625
    %v2580 = vmul.f32 %v2578, 0.00390625
    %vm2583 = vcmask 1041409
    %v2584 = vsel %vm2583, %v2580, %v2579
    %2586 = vst [vmem:[#allocation27] sm:$0x3] %v2584
    %v2587 = vld [vmem:[#allocation33] sm:$0xff]
    %v2588 = vld [vmem:[#allocation33 + $0x8] sm:$0xff]
    %v2589 = vld [vmem:[#allocation33 + $0x10] sm:$0xff]
    %v2590 = vld [vmem:[#allocation33 + $0x18] sm:$0xff]
    %v2591 = vld [vmem:[#allocation33 + $0x20] sm:$0xff]
    %v2592 = vld [vmem:[#allocation33 + $0x28] sm:$0xff]
    %v2593 = vld [vmem:[#allocation33 + $0x30] sm:$0xff]
    %v2594 = vld [vmem:[#allocation33 + $0x38] sm:$0xff]
    %v2595 = vld [vmem:[#allocation33 + $0x40] sm:$0xff]
    %v2596 = vld [vmem:[#allocation33 + $0x48] sm:$0xff]
    %v2597 = vld [vmem:[#allocation33 + $0x50] sm:$0xff]
    %v2598 = vld [vmem:[#allocation33 + $0x58] sm:$0xff]
    %v2599 = vld [vmem:[#allocation33 + $0x60] sm:$0xff]
    %v2600 = vld [vmem:[#allocation33 + $0x68] sm:$0xff]
    %v2601 = vld [vmem:[#allocation33 + $0x70] sm:$0xff]
    %v2602 = vld [vmem:[#allocation33 + $0x78] sm:$0xff]
    %2603 = vmatprep.subr.mxu0 0.0
    %2604 = vmatpush1.msra.mxu0 %v2587
    %2605 = vmatprep.subr.mxu0 0.0
    %2606 = vmatpush1.msra.mxu0 %v2588
    %2607 = vmatprep.subr.mxu0 0.0
    %2608 = vmatpush1.msra.mxu0 %v2589
    %2609 = vmatprep.subr.mxu0 0.0
    %2610 = vmatpush1.msra.mxu0 %v2590
    %2611 = vmatprep.subr.mxu0 0.0
    %2612 = vmatpush1.msra.mxu0 %v2591
    %2613 = vmatprep.subr.mxu0 0.0
    %2614 = vmatpush1.msra.mxu0 %v2592
    %2615 = vmatprep.subr.mxu0 0.0
    %2616 = vmatpush1.msra.mxu0 %v2593
    %2617 = vmatprep.subr.mxu0 0.0
    %2618 = vmatpush1.msra.mxu0 %v2594
    %2619 = vmatprep.subr.mxu0 0.0
    %2620 = vmatpush1.msra.mxu0 %v2595
    %2621 = vmatprep.subr.mxu0 0.0
    %2622 = vmatpush1.msra.mxu0 %v2596
    %2623 = vmatprep.subr.mxu0 0.0
    %2624 = vmatpush1.msra.mxu0 %v2597
    %2625 = vmatprep.subr.mxu0 0.0
    %2626 = vmatpush1.msra.mxu0 %v2598
    %2627 = vmatprep.subr.mxu0 0.0
    %2628 = vmatpush1.msra.mxu0 %v2599
    %2629 = vmatprep.subr.mxu0 0.0
    %2630 = vmatpush1.msra.mxu0 %v2600
    %2631 = vmatprep.subr.mxu0 0.0
    %2632 = vmatpush1.msra.mxu0 %v2601
    %2633 = vmatprep.subr.mxu0 0.0
    %2634 = vmatpush1.msra.mxu0 %v2602
    %2635 = vmatprep.subr.mxu0 0.0
    %2636 = vmatpush1.msra.mxu0 0.0
    %2637 = vmatprep.subr.mxu0 0.0
    %2638 = vmatpush1.msra.mxu0 0.0
    %2639 = vmatprep.subr.mxu0 0.0
    %2640 = vmatpush1.msra.mxu0 0.0
    %2641 = vmatprep.subr.mxu0 0.0
    %2642 = vmatpush1.msra.mxu0 0.0
    %2643 = vmatprep.subr.mxu0 0.0
    %2644 = vmatpush1.msra.mxu0 0.0
    %2645 = vmatprep.subr.mxu0 0.0
    %2646 = vmatpush1.msra.mxu0 0.0
    %2647 = vmatprep.subr.mxu0 0.0
    %2648 = vmatpush1.msra.mxu0 0.0
    %2649 = vmatprep.subr.mxu0 0.0
    %2650 = vmatpush1.msra.mxu0 0.0
    %2651 = vmatprep.subr.mxu0 0.0
    %2652 = vmatpush1.msra.mxu0 0.0
    %2653 = vmatprep.subr.mxu0 0.0
    %2654 = vmatpush1.msra.mxu0 0.0
    %2655 = vmatprep.subr.mxu0 0.0
    %2656 = vmatpush1.msra.mxu0 0.0
    %2657 = vmatprep.subr.mxu0 0.0
    %2658 = vmatpush1.msra.mxu0 0.0
    %2659 = vmatprep.subr.mxu0 0.0
    %2660 = vmatpush1.msra.mxu0 0.0
    %2661 = vmatprep.subr.mxu0 0.0
    %2662 = vmatpush1.msra.mxu0 0.0
    %2663 = vmatprep.subr.mxu0 0.0
    %2664 = vmatpush1.msra.mxu0 0.0
    %2665 = vmatprep.subr.mxu0 0.0
    %2666 = vmatpush1.msra.mxu0 0.0
    %2667 = vmatprep.mubr.f32.mxu0 0.0
    %2668 = vmatmul.mubr.f32.gmra.mrb[0].mxu0 %v2584
    %v2669 = vpop.f32.mrb[0].mxu0
    %v2670 = vadd.f32 0.0, %v2669
    %v2671 = vpop.f32.mrb[0].mxu0
    %2672 = vdwg.mxu0
    %2673 = vst [vmem:[#allocation29] sm:$0x3] %v2670
    // Predicated region
    $region26: #{model_wrapper_forward.2} parent=1 // pred_check
      _
    $region27: #{model_wrapper_forward.2} parent=1 // pred_check_branch
      %2675 = sbr.rel (0) target = $region29
    $region28: #{model_wrapper_forward.2} parent=1 // pred_region
      %s2677 = ssub.s32 32, 32
      %2678 = vsyncadd [#allocation28], %s2677
      %s2680 = sshll.u32 [#allocation27], 4
      %s2681 = int_to_ptr.vmem [resolvable:$true] %s2680
      %2683 = dma.vmem_to_hbm [thread:$0]  %s2681, 32, %s12, [#allocation28]
    $region29: #{model_wrapper_forward.2} parent=1 // pred_fallthru
      _
    // Predicated region
    $region30: #{model_wrapper_forward.2} parent=1 // pred_check
      _
    $region31: #{model_wrapper_forward.2} parent=1 // pred_check_branch
      %2685 = sbr.rel (0) target = $region33
    $region32: #{model_wrapper_forward.2} parent=1 // pred_region
      %s2687 = ssub.s32 32, 32
      %2688 = vsyncadd [#allocation30], %s2687
      %s2690 = sshll.u32 [#allocation29], 4
      %s2691 = int_to_ptr.vmem [resolvable:$true] %s2690
      %2693 = dma.vmem_to_hbm [thread:$0]  %s2691, 32, %s13, [#allocation30]
    $region33: #{model_wrapper_forward.2} parent=1 // pred_fallthru
      _
    // Predicated region
    $region34: #{model_wrapper_forward.2} parent=1 // pred_check
      _
    $region35: #{model_wrapper_forward.2} parent=1 // pred_check_branch
      %2695 = sbr.rel (0) target = $region37
    $region36: #{model_wrapper_forward.2} parent=1 // pred_region
      %2696 = dma.done [#allocation28], 32
    $region37: #{model_wrapper_forward.2} parent=1 // pred_fallthru
      _
    // Predicated region
    $region38: #{model_wrapper_forward.2} parent=1 // pred_check
      _
    $region39: #{model_wrapper_forward.2} parent=1 // pred_check_branch
      %2698 = sbr.rel (0) target = $region41
    $region40: #{model_wrapper_forward.2} parent=1 // pred_region
      %2699 = dma.done [#allocation30], 32
    $region41: #{model_wrapper_forward.2} parent=1 // pred_fallthru
      _
    %2700 = vsyncpa [#allocation28], 1
    %2701 = vsyncpa [#allocation30], 1

</llo_original>
